<compile_context>
chip_gen: v7x
topology: tpu7x:2x2x1
jax: 0.10.0
libtpu: 0.0.40
codegen_flags: <defaults>
</compile_context>

<pallas_src>
import functools

import jax
import jax.numpy as jnp
from jax.experimental import pallas as pl
from jax.experimental.pallas import tpu as pltpu


_SUB = 16  # bf16 sublane packing: keep every weight-slab section 16-row aligned


def _round_up(x, m):
    return (x + m - 1) // m * m


# ---------------------------------------------------------------------------
# Fused forward kernel (one batch tile per grid step)
# ---------------------------------------------------------------------------
def _fused_kernel(txt_ref, mask_ref, aud_ref, y_ref, w_ref, b_ref, loss_ref, *,
                  VP, HW, D, DH, C, offs, lambda_v, lambda_fe, batch_total):
    TB, S = txt_ref.shape
    D2, DH2 = 2 * D, 2 * DH
    o_ep, o_aud, o_fs1, o_fs2, o_fe1, o_fe2, o_cls = offs

    def dotf(x, w):
        # bf16 MXU inputs, f32 accumulation; all non-dot math stays in f32.
        return jnp.dot(x.astype(w.dtype), w, preferred_element_type=jnp.float32)

    # --- text encoder stand-in: embedding gather + masked mean pool, expressed
    #     as a one-hot-count matmul against the pack-time folded (emb @ w_txt).
    # TODO(synk): BertClf(args) is an external module; replaced by this
    # deterministic pooled-embedding projection producing the expected [B, D].
    txt = txt_ref[...]
    mask = mask_ref[...]
    lane_iota = jax.lax.broadcasted_iota(jnp.int32, (TB, VP), 1)
    counts = jnp.zeros((TB, VP), jnp.float32)
    for s in range(S):                                      # tiny static unroll
        counts = counts + jnp.where(lane_iota == txt[:, s:s + 1],
                                    mask[:, s:s + 1], 0.0)
    inv_len = 1.0 / jnp.maximum(jnp.sum(mask, axis=1, keepdims=True), 1.0)
    t_h = dotf(counts, w_ref[o_ep:o_ep + VP, 0:D]) * inv_len             # (TB, D)

    # --- audio encoder stand-in: flatten + linear projection.
    # TODO(synk): resnet18('audio') is an external module; replaced likewise.
    a_h = dotf(aud_ref[...], w_ref[o_aud:o_aud + HW, 0:D])               # (TB, D)

    # [t_h | a_h] lane-adjacent; one bias row covers both modalities.
    x2 = jnp.concatenate([t_h, a_h], axis=1) + b_ref[0:1, :]             # (TB, 2D)

    # --- feature_selection (shared MLP), block-diagonal over the modalities ->
    #     one MXU pass per layer for both modalities at once.
    h = jnp.maximum(dotf(x2, w_ref[o_fs1:o_fs1 + D2, 0:DH2])
                    + b_ref[1:2, 0:DH2], 0.0)
    pre = dotf(h, w_ref[o_fs2:o_fs2 + DH2, 0:D2]) + b_ref[2:3, :]
    gate = 1.0 / (1.0 + jnp.exp(-pre))                                    # sigmoid
    xo = x2 * gate                                      # (TB, 2D) = [t_out|a_out]

    # TODO(synk): the W_Q/W_K/W_V attention + softmax + bmm block of the
    # reference writes only a local tensor V never read by the returned losses
    # (its attention_scale broadcast only type-checks for feature_dim == 2);
    # it is elided here with no effect on the outputs.

    # --- feature_extractor on cat([t_out, a_out], dim=1) == xo's lane layout.
    h1 = jnp.maximum(dotf(xo, w_ref[o_fe1:o_fe1 + D2, 0:D])
                     + b_ref[3:4, 0:D], 0.0)
    z_c = dotf(h1, w_ref[o_fe2:o_fe2 + D, 0:D]) + b_ref[4:5, 0:D]         # (TB, D)

    # --- causal classifier
    cw = w_ref[o_cls:o_cls + D, 0:C]                                      # (D, C)
    logits = dotf(z_c, cw) + b_ref[5:6, 0:C]                              # (TB, C)

    # p = softmax(logits) directly (EUP approx reciprocal; no log round trip).
    m_l = jnp.max(logits, axis=1, keepdims=True)
    e_l = jnp.exp(logits - m_l)
    p = e_l * pl.reciprocal(jnp.sum(e_l, axis=1, keepdims=True), approx=True)

    # delta = -grad_{z_c} sum(log_softmax(classifier(z_c)))
    # TODO(synk): the reference passes grad_outputs=ones_like(z_c) (shape (B,D))
    # for a (B,C)-shaped output; interpreted as an all-ones cotangent over the
    # C classifier outputs, giving this analytic VJP.
    g_logits = 1.0 - float(C) * p                                         # (TB, C)
    delta = -jax.lax.dot_general(g_logits.astype(cw.dtype), cw,
                                 (((1,), (1,)), ((), ())),
                                 preferred_element_type=jnp.float32)      # (TB, D)
    z_c_bar = z_c + delta
    # classifier(z_c_bar) reusing logits: (z_c + delta) @ cw + cb.
    logits_cf = logits + dotf(delta, cw)                                  # (TB, C)

    # --- KL(batchmean): target = softmax(z_c), input = log_softmax(z_c_bar),
    #     both over the D feature lanes (matches the reference dims); f32 chain.
    m_c = jnp.max(z_c, axis=1, keepdims=True)
    e_c = jnp.exp(z_c - m_c)
    se_c = jnp.sum(e_c, axis=1, keepdims=True)
    log_p_c = (z_c - m_c) - jnp.log(se_c)
    p_c = e_c / se_c
    m_b = jnp.max(z_c_bar, axis=1, keepdims=True)
    log_p_bar = (z_c_bar - m_b) - jnp.log(
        jnp.sum(jnp.exp(z_c_bar - m_b), axis=1, keepdims=True))
    kl_sum = jnp.sum(p_c * (log_p_c - log_p_bar))

    # --- risks (first-max tie break; torch argmax tie behavior unspecified)
    def argmax_rows(x):
        idx = jax.lax.broadcasted_iota(jnp.int32, x.shape, 1)
        mx = jnp.max(x, axis=1, keepdims=True)
        return jnp.min(jnp.where(x == mx, idx, jnp.iinfo(jnp.int32).max),
                       axis=1, keepdims=True)

    y = y_ref[...]                                                        # (TB, 1)
    suff_sum = jnp.sum((argmax_rows(logits) != y).astype(jnp.float32))
    nec_sum = jnp.sum((argmax_rows(logits_cf) == y).astype(jnp.float32))

    inv_b = 1.0 / batch_total
    kl = kl_sum * inv_b
    c3 = (suff_sum + nec_sum) * inv_b

    # Accumulate the 4 loss scalars in the resident SMEM output across batch
    # tiles (grid axis is "arbitrary" -> safe sequential accumulator).
    @pl.when(pl.program_id(0) == 0)
    def _init():
        loss_ref[0] = 0.0
        loss_ref[1] = 0.0
        loss_ref[2] = 0.0
        loss_ref[3] = 0.0

    # loss_v and loss_fe are (as in the reference) the same KL value.
    loss_ref[0] += c3 + (lambda_v + lambda_fe) * kl
    loss_ref[1] += c3
    loss_ref[2] += kl
    loss_ref[3] += kl


# ---------------------------------------------------------------------------
# One-time parameter packing (hoisted out of the per-call path)
# ---------------------------------------------------------------------------
def pack_params(params):
    """Pack all weights/biases into two slabs ONCE at init.
    Weight slab is bf16 (MXU input dtype), bias slab is f32."""
    f32 = jnp.float32
    emb = params["embedding"].astype(f32)
    w_txt, b_txt = params["w_txt"], params["b_txt"]
    w_aud, b_aud = params["w_aud"], params["b_aud"]
    fs_w1, fs_b1 = params["fs_w1"], params["fs_b1"]
    fs_w2, fs_b2 = params["fs_w2"], params["fs_b2"]
    fe_w1, fe_b1 = params["fe_w1"], params["fe_b1"]
    fe_w2, fe_b2 = params["fe_w2"], params["fe_b2"]
    cls_w, cls_b = params["cls_w"], params["cls_b"]

    VOCAB = emb.shape[0]
    HW = w_aud.shape[0]
    D = fe_w2.shape[0]
    DH = fs_w1.shape[1]
    C = cls_w.shape[1]
    D2, DH2 = 2 * D, 2 * DH
    WIDTH = D2

    # Fold the text projection into the embedding table (pack-time, free):
    # masked-mean-pool(emb[txt]) @ w_txt == (counts @ (emb @ w_txt)) / len.
    emb_proj = emb @ w_txt                                                # (V, D)

    zd = jnp.zeros((D, DH), f32)
    zh = jnp.zeros((DH, D), f32)
    fs1bd = jnp.block([[fs_w1, zd], [zd, fs_w1]])                         # (2D, 2DH)
    fs2bd = jnp.block([[fs_w2, zh], [zh, fs_w2]])                         # (2DH, 2D)

    sections = [emb_proj, w_aud, fs1bd, fs2bd, fe_w1, fe_w2, cls_w]
    padded, offs, r = [], [], 0
    for w in sections:
        k, n = w.shape
        kp = _round_up(k, _SUB)                 # 16-row aligned section starts
        padded.append(jnp.pad(w.astype(f32), ((0, kp - k), (0, WIDTH - n))))
        offs.append(r)
        r += kp
    w_slab = jnp.concatenate(padded, axis=0).astype(jnp.bfloat16)

    bias_rows = [
        jnp.concatenate([b_txt, b_aud]),        # row 0: [t | a] projection bias
        jnp.concatenate([fs_b1, fs_b1]),        # row 1: block-diag fs1 bias
        jnp.concatenate([fs_b2, fs_b2]),        # row 2: block-diag fs2 bias
        fe_b1,                                  # row 3
        fe_b2,                                  # row 4
        cls_b,                                  # row 5
    ]
    b_slab = jnp.stack(
        [jnp.pad(v.astype(f32), (0, WIDTH - v.shape[0])) for v in bias_rows]
        + [jnp.zeros((WIDTH,), f32)] * 2, axis=0)                         # (8, 2D)

    meta = dict(VP=_round_up(VOCAB, _SUB), HW=HW, D=D, DH=DH, C=C,
                offs=tuple(offs))
    return w_slab, b_slab, meta


# ---------------------------------------------------------------------------
# Full forward: a single pallas_call (batch-tiled grid)
# ---------------------------------------------------------------------------
def mml_base_vta_late_forward(txt, mask_t, segment_t, audio, visual, y_true,
                              w_slab, b_slab, *, meta, lambda_v, lambda_fe,
                              batch_tile=128):
    # TODO(synk): the visual branch (resnet18('visual') + adaptive_avg_pool3d)
    # and segment ids never reach the returned losses; skipped entirely.
    del segment_t, visual
    B = audio.shape[0]
    S = txt.shape[1]
    HW = meta["HW"]

    audio2 = audio.reshape(B, HW)                 # view only (unsqueeze+flatten)
    y2 = y_true.reshape(B, 1).astype(jnp.int32)
    mask_f = mask_t.astype(jnp.float32)
    txt_i = txt.astype(jnp.int32)

    tb = B if B <= batch_tile else batch_tile
    assert B % tb == 0 and (tb == B or tb % 8 == 0), "bad batch tile"
    grid = (B // tb,)

    kernel = functools.partial(
        _fused_kernel, VP=meta["VP"], HW=HW, D=meta["D"], DH=meta["DH"],
        C=meta["C"], offs=meta["offs"], lambda_v=lambda_v, lambda_fe=lambda_fe,
        batch_total=B)

    losses = pl.pallas_call(
        kernel,
        out_shape=jax.ShapeDtypeStruct((4,), jnp.float32),
        grid=grid,
        in_specs=[
            pl.BlockSpec((tb, S), lambda i: (i, 0)),        # txt tokens
            pl.BlockSpec((tb, S), lambda i: (i, 0)),        # attention mask
            pl.BlockSpec((tb, HW), lambda i: (i, 0)),       # flattened audio
            pl.BlockSpec((tb, 1), lambda i: (i, 0)),        # labels
            pl.BlockSpec(w_slab.shape, lambda i: (0, 0)),   # weight slab (resident)
            pl.BlockSpec(b_slab.shape, lambda i: (0, 0)),   # bias slab (resident)
        ],
        out_specs=pl.BlockSpec((4,), lambda i: (0,),
                               memory_space=pltpu.MemorySpace.SMEM),
        compiler_params=pltpu.CompilerParams(
            # Loss scalars accumulate across batch tiles -> "arbitrary".
            # TODO(synk): for very large B on v7x, emit per-tile partials and
            # mark this axis "parallel" to use both TensorCores.
            dimension_semantics=("arbitrary",)),
    )(txt_i, mask_f, audio2, y2, w_slab, b_slab)
    return losses[0], losses[1], losses[2], losses[3]


# ---------------------------------------------------------------------------
# Parameter init (deterministic, PyTorch nn.Linear-style uniform bounds)
# ---------------------------------------------------------------------------
def linear_init(key, fan_in, fan_out):
    k1, k2 = jax.random.split(key)
    bound = 1.0 / (fan_in ** 0.5)
    w = jax.random.uniform(k1, (fan_in, fan_out), jnp.float32, -bound, bound)
    b = jax.random.uniform(k2, (fan_out,), jnp.float32, -bound, bound)
    return w, b


if __name__ == "__main__":
    # --- hyperparams (args.*) ---
    B = 4
    D = 32            # args.feature_dim
    DH = D // 2
    C = 8             # args.n_classes
    LAMBDA_V = 0.5    # args.lambda_v
    LAMBDA_FE = 0.25  # args.lambda_fe

    H = W = 16                       # audio spectrogram
    T, VC, VH, VW = 2, 3, 8, 8       # visual clip
    S, VOCAB, E = 8, 50, 32          # text

    key = jax.random.PRNGKey(0)
    ks = jax.random.split(key, 16)

    # --- example inputs ---
    txt = jax.random.randint(ks[0], (B, S), 0, VOCAB)
    mask_t = (jax.random.uniform(ks[1], (B, S)) > 0.2).astype(jnp.float32)
    mask_t = mask_t.at[:, 0].set(1.0)
    segment_t = jnp.zeros((B, S), jnp.int32)
    audio = jax.random.normal(ks[2], (B, H, W), jnp.float32)
    visual = jax.random.normal(ks[3], (B, T, VC, VH, VW), jnp.float32)
    y_true = jax.random.randint(ks[4], (B,), 0, C)

    # --- parameters ---
    params = {}
    params["embedding"] = jax.random.normal(ks[5], (VOCAB, E), jnp.float32) * 0.02
    params["w_txt"], params["b_txt"] = linear_init(ks[6], E, D)
    params["w_aud"], params["b_aud"] = linear_init(ks[7], H * W, D)
    params["fs_w1"], params["fs_b1"] = linear_init(ks[8], D, DH)
    params["fs_w2"], params["fs_b2"] = linear_init(ks[9], DH, D)
    params["fe_w1"], params["fe_b1"] = linear_init(ks[10], 2 * D, D)
    params["fe_w2"], params["fe_b2"] = linear_init(ks[11], D, D)
    params["cls_w"], params["cls_b"] = linear_init(ks[12], D, C)
    # TODO(synk): W_Q/W_K/W_V, attention_scale and W_causal exist in __init__
    # but never influence the returned losses; they are not materialized here.

    # Pack ONCE at init; the slabs are the canonical params of the forward.
    w_slab, b_slab, meta = pack_params(params)

    fwd = jax.jit(functools.partial(mml_base_vta_late_forward, meta=meta,
                                    lambda_v=LAMBDA_V, lambda_fe=LAMBDA_FE))
    total_loss, c3_risk, loss_v, loss_fe = fwd(
        txt, mask_t, segment_t, audio, visual, y_true, w_slab, b_slab)
    jax.block_until_ready((total_loss, c3_risk, loss_v, loss_fe))
    print("KERNEL_OK")
</pallas_src>

<mosaic_0001>
module attributes {stable_mosaic.version = 11 : i64} {
  func.func @_fused_kernel(%arg0: i32, %arg1: memref<4x8xi32, #tpu.memory_space<vmem>>, %arg2: memref<4x8xf32, #tpu.memory_space<vmem>>, %arg3: memref<4x256xf32, #tpu.memory_space<vmem>>, %arg4: memref<4x1xi32, #tpu.memory_space<vmem>>, %arg5: memref<544x64xbf16, #tpu.memory_space<vmem>>, %arg6: memref<8x64xf32, #tpu.memory_space<vmem>>, %arg7: memref<4xf32, #tpu.memory_space<smem>>) attributes {dimension_semantics = [#tpu.dimension_semantics<arbitrary>], iteration_bounds = array<i64: 1>, scalar_prefetch = 0 : i64, scratch_operands = 0 : i64, tpu.core_type = #tpu.core_type<tc>, window_params = [{transform_indices = @transform_0, window_bounds = array<i64: 4, 8>}, {transform_indices = @transform_1, window_bounds = array<i64: 4, 8>}, {transform_indices = @transform_2, window_bounds = array<i64: 4, 256>}, {transform_indices = @transform_3, window_bounds = array<i64: 4, 1>}, {pipeline_mode = #tpu.pipeline_mode<synchronous>, transform_indices = @transform_4, window_bounds = array<i64: 544, 64>}, {pipeline_mode = #tpu.pipeline_mode<synchronous>, transform_indices = @transform_5, window_bounds = array<i64: 8, 64>}, {transform_indices = @transform_6, window_bounds = array<i64: 4>}]} {
    %c0 = arith.constant 0 : index
    %c0_0 = arith.constant 0 : index
    %0 = vector.load %arg1[%c0, %c0_0] : memref<4x8xi32, #tpu.memory_space<vmem>>, vector<4x8xi32>
    %c0_1 = arith.constant 0 : index
    %c0_2 = arith.constant 0 : index
    %1 = vector.load %arg2[%c0_1, %c0_2] : memref<4x8xf32, #tpu.memory_space<vmem>>, vector<4x8xf32>
    %2 = tpu.iota {dimensions = array<i32: 1>} : vector<4x64xi32>
    %cst = arith.constant 0.000000e+00 : f32
    %3 = vector.broadcast %cst : f32 to vector<4x64xf32>
    %4 = vector.extract_strided_slice %0 {offsets = [0, 0], sizes = [4, 1], strides = [1, 1]} : vector<4x8xi32> to vector<4x1xi32>
    %5 = vector.broadcast %4 : vector<4x1xi32> to vector<4x64xi32>
    %6 = arith.cmpi eq, %2, %5 : vector<4x64xi32>
    %7 = vector.extract_strided_slice %1 {offsets = [0, 0], sizes = [4, 1], strides = [1, 1]} : vector<4x8xf32> to vector<4x1xf32>
    %cst_3 = arith.constant 0.000000e+00 : f32
    %8 = vector.shape_cast %7 : vector<4x1xf32> to vector<4x1xf32>
    %9 = vector.broadcast %8 : vector<4x1xf32> to vector<4x64xf32>
    %10 = vector.broadcast %cst_3 : f32 to vector<4x64xf32>
    %11 = arith.select %6, %9, %10 : vector<4x64xi1>, vector<4x64xf32>
    %12 = arith.addf %3, %11 : vector<4x64xf32>
    %13 = vector.extract_strided_slice %0 {offsets = [0, 1], sizes = [4, 1], strides = [1, 1]} : vector<4x8xi32> to vector<4x1xi32>
    %14 = vector.broadcast %13 : vector<4x1xi32> to vector<4x64xi32>
    %15 = arith.cmpi eq, %2, %14 : vector<4x64xi32>
    %16 = vector.extract_strided_slice %1 {offsets = [0, 1], sizes = [4, 1], strides = [1, 1]} : vector<4x8xf32> to vector<4x1xf32>
    %cst_4 = arith.constant 0.000000e+00 : f32
    %17 = vector.shape_cast %16 : vector<4x1xf32> to vector<4x1xf32>
    %18 = vector.broadcast %17 : vector<4x1xf32> to vector<4x64xf32>
    %19 = vector.broadcast %cst_4 : f32 to vector<4x64xf32>
    %20 = arith.select %15, %18, %19 : vector<4x64xi1>, vector<4x64xf32>
    %21 = arith.addf %12, %20 : vector<4x64xf32>
    %22 = vector.extract_strided_slice %0 {offsets = [0, 2], sizes = [4, 1], strides = [1, 1]} : vector<4x8xi32> to vector<4x1xi32>
    %23 = vector.broadcast %22 : vector<4x1xi32> to vector<4x64xi32>
    %24 = arith.cmpi eq, %2, %23 : vector<4x64xi32>
    %25 = vector.extract_strided_slice %1 {offsets = [0, 2], sizes = [4, 1], strides = [1, 1]} : vector<4x8xf32> to vector<4x1xf32>
    %cst_5 = arith.constant 0.000000e+00 : f32
    %26 = vector.shape_cast %25 : vector<4x1xf32> to vector<4x1xf32>
    %27 = vector.broadcast %26 : vector<4x1xf32> to vector<4x64xf32>
    %28 = vector.broadcast %cst_5 : f32 to vector<4x64xf32>
    %29 = arith.select %24, %27, %28 : vector<4x64xi1>, vector<4x64xf32>
    %30 = arith.addf %21, %29 : vector<4x64xf32>
    %31 = vector.extract_strided_slice %0 {offsets = [0, 3], sizes = [4, 1], strides = [1, 1]} : vector<4x8xi32> to vector<4x1xi32>
    %32 = vector.broadcast %31 : vector<4x1xi32> to vector<4x64xi32>
    %33 = arith.cmpi eq, %2, %32 : vector<4x64xi32>
    %34 = vector.extract_strided_slice %1 {offsets = [0, 3], sizes = [4, 1], strides = [1, 1]} : vector<4x8xf32> to vector<4x1xf32>
    %cst_6 = arith.constant 0.000000e+00 : f32
    %35 = vector.shape_cast %34 : vector<4x1xf32> to vector<4x1xf32>
    %36 = vector.broadcast %35 : vector<4x1xf32> to vector<4x64xf32>
    %37 = vector.broadcast %cst_6 : f32 to vector<4x64xf32>
    %38 = arith.select %33, %36, %37 : vector<4x64xi1>, vector<4x64xf32>
    %39 = arith.addf %30, %38 : vector<4x64xf32>
    %40 = vector.extract_strided_slice %0 {offsets = [0, 4], sizes = [4, 1], strides = [1, 1]} : vector<4x8xi32> to vector<4x1xi32>
    %41 = vector.broadcast %40 : vector<4x1xi32> to vector<4x64xi32>
    %42 = arith.cmpi eq, %2, %41 : vector<4x64xi32>
    %43 = vector.extract_strided_slice %1 {offsets = [0, 4], sizes = [4, 1], strides = [1, 1]} : vector<4x8xf32> to vector<4x1xf32>
    %cst_7 = arith.constant 0.000000e+00 : f32
    %44 = vector.shape_cast %43 : vector<4x1xf32> to vector<4x1xf32>
    %45 = vector.broadcast %44 : vector<4x1xf32> to vector<4x64xf32>
    %46 = vector.broadcast %cst_7 : f32 to vector<4x64xf32>
    %47 = arith.select %42, %45, %46 : vector<4x64xi1>, vector<4x64xf32>
    %48 = arith.addf %39, %47 : vector<4x64xf32>
    %49 = vector.extract_strided_slice %0 {offsets = [0, 5], sizes = [4, 1], strides = [1, 1]} : vector<4x8xi32> to vector<4x1xi32>
    %50 = vector.broadcast %49 : vector<4x1xi32> to vector<4x64xi32>
    %51 = arith.cmpi eq, %2, %50 : vector<4x64xi32>
    %52 = vector.extract_strided_slice %1 {offsets = [0, 5], sizes = [4, 1], strides = [1, 1]} : vector<4x8xf32> to vector<4x1xf32>
    %cst_8 = arith.constant 0.000000e+00 : f32
    %53 = vector.shape_cast %52 : vector<4x1xf32> to vector<4x1xf32>
    %54 = vector.broadcast %53 : vector<4x1xf32> to vector<4x64xf32>
    %55 = vector.broadcast %cst_8 : f32 to vector<4x64xf32>
    %56 = arith.select %51, %54, %55 : vector<4x64xi1>, vector<4x64xf32>
    %57 = arith.addf %48, %56 : vector<4x64xf32>
    %58 = vector.extract_strided_slice %0 {offsets = [0, 6], sizes = [4, 1], strides = [1, 1]} : vector<4x8xi32> to vector<4x1xi32>
    %59 = vector.broadcast %58 : vector<4x1xi32> to vector<4x64xi32>
    %60 = arith.cmpi eq, %2, %59 : vector<4x64xi32>
    %61 = vector.extract_strided_slice %1 {offsets = [0, 6], sizes = [4, 1], strides = [1, 1]} : vector<4x8xf32> to vector<4x1xf32>
    %cst_9 = arith.constant 0.000000e+00 : f32
    %62 = vector.shape_cast %61 : vector<4x1xf32> to vector<4x1xf32>
    %63 = vector.broadcast %62 : vector<4x1xf32> to vector<4x64xf32>
    %64 = vector.broadcast %cst_9 : f32 to vector<4x64xf32>
    %65 = arith.select %60, %63, %64 : vector<4x64xi1>, vector<4x64xf32>
    %66 = arith.addf %57, %65 : vector<4x64xf32>
    %67 = vector.extract_strided_slice %0 {offsets = [0, 7], sizes = [4, 1], strides = [1, 1]} : vector<4x8xi32> to vector<4x1xi32>
    %68 = vector.broadcast %67 : vector<4x1xi32> to vector<4x64xi32>
    %69 = arith.cmpi eq, %2, %68 : vector<4x64xi32>
    %70 = vector.extract_strided_slice %1 {offsets = [0, 7], sizes = [4, 1], strides = [1, 1]} : vector<4x8xf32> to vector<4x1xf32>
    %cst_10 = arith.constant 0.000000e+00 : f32
    %71 = vector.shape_cast %70 : vector<4x1xf32> to vector<4x1xf32>
    %72 = vector.broadcast %71 : vector<4x1xf32> to vector<4x64xf32>
    %73 = vector.broadcast %cst_10 : f32 to vector<4x64xf32>
    %74 = arith.select %69, %72, %73 : vector<4x64xi1>, vector<4x64xf32>
    %75 = arith.addf %66, %74 : vector<4x64xf32>
    %cst_11 = arith.constant dense<0.000000e+00> : vector<4xf32>
    %76 = vector.multi_reduction <add>, %1, %cst_11 [1] : vector<4x8xf32> to vector<4xf32>
    %77 = vector.shape_cast %76 : vector<4xf32> to vector<4x1xf32>
    %cst_12 = arith.constant 1.000000e+00 : f32
    %78 = vector.broadcast %cst_12 : f32 to vector<4x1xf32>
    %79 = arith.maximumf %77, %78 : vector<4x1xf32>
    %cst_13 = arith.constant 1.000000e+00 : f32
    %80 = vector.broadcast %cst_13 : f32 to vector<4x1xf32>
    %81 = arith.divf %80, %79 : vector<4x1xf32>
    %c0_14 = arith.constant 0 : index
    %c0_15 = arith.constant 0 : index
    %82 = vector.load %arg5[%c0_14, %c0_15] : memref<544x64xbf16, #tpu.memory_space<vmem>>, vector<64x32xbf16>
    %83 = arith.truncf %75 : vector<4x64xf32> to vector<4x64xbf16>
    %cst_16 = arith.constant dense<0.000000e+00> : vector<4x32xf32>
    %84 = tpu.matmul %83, %82, %cst_16 {dimension_numbers = #tpu.dot_dimension_numbers<[1], [0], [0], [1], [0, 0, 1, 1], [], []>} : vector<4x64xbf16>, vector<64x32xbf16>, vector<4x32xf32> -> vector<4x32xf32>
    %85 = vector.broadcast %81 : vector<4x1xf32> to vector<4x32xf32>
    %86 = arith.mulf %84, %85 : vector<4x32xf32>
    %c0_17 = arith.constant 0 : index
    %c0_18 = arith.constant 0 : index
    %87 = vector.load %arg3[%c0_17, %c0_18] : memref<4x256xf32, #tpu.memory_space<vmem>>, vector<4x256xf32>
    %c64 = arith.constant 64 : index
    %c0_19 = arith.constant 0 : index
    %88 = vector.load %arg5[%c64, %c0_19] : memref<544x64xbf16, #tpu.memory_space<vmem>>, vector<256x32xbf16>
    %89 = arith.truncf %87 : vector<4x256xf32> to vector<4x256xbf16>
    %cst_20 = arith.constant dense<0.000000e+00> : vector<4x32xf32>
    %90 = tpu.matmul %89, %88, %cst_20 {dimension_numbers = #tpu.dot_dimension_numbers<[1], [0], [0], [1], [0, 0, 1, 1], [], []>} : vector<4x256xbf16>, vector<256x32xbf16>, vector<4x32xf32> -> vector<4x32xf32>
    %91 = tpu.concatenate %86, %90 in 1 : vector<4x32xf32>, vector<4x32xf32> -> vector<4x64xf32>
    %c0_21 = arith.constant 0 : index
    %c0_22 = arith.constant 0 : index
    %92 = vector.load %arg6[%c0_21, %c0_22] : memref<8x64xf32, #tpu.memory_space<vmem>>, vector<1x64xf32>
    %93 = vector.broadcast %92 : vector<1x64xf32> to vector<4x64xf32>
    %94 = arith.addf %91, %93 : vector<4x64xf32>
    %c320 = arith.constant 320 : index
    %c0_23 = arith.constant 0 : index
    %95 = vector.load %arg5[%c320, %c0_23] : memref<544x64xbf16, #tpu.memory_space<vmem>>, vector<64x32xbf16>
    %96 = arith.truncf %94 : vector<4x64xf32> to vector<4x64xbf16>
    %cst_24 = arith.constant dense<0.000000e+00> : vector<4x32xf32>
    %97 = tpu.matmul %96, %95, %cst_24 {dimension_numbers = #tpu.dot_dimension_numbers<[1], [0], [0], [1], [0, 0, 1, 1], [], []>} : vector<4x64xbf16>, vector<64x32xbf16>, vector<4x32xf32> -> vector<4x32xf32>
    %c1 = arith.constant 1 : index
    %c0_25 = arith.constant 0 : index
    %98 = vector.load %arg6[%c1, %c0_25] : memref<8x64xf32, #tpu.memory_space<vmem>>, vector<1x32xf32>
    %99 = vector.broadcast %98 : vector<1x32xf32> to vector<4x32xf32>
    %100 = arith.addf %97, %99 : vector<4x32xf32>
    %cst_26 = arith.constant 0.000000e+00 : f32
    %101 = vector.broadcast %cst_26 : f32 to vector<4x32xf32>
    %102 = arith.maximumf %100, %101 : vector<4x32xf32>
    %c384 = arith.constant 384 : index
    %c0_27 = arith.constant 0 : index
    %103 = vector.load %arg5[%c384, %c0_27] : memref<544x64xbf16, #tpu.memory_space<vmem>>, vector<32x64xbf16>
    %104 = arith.truncf %102 : vector<4x32xf32> to vector<4x32xbf16>
    %cst_28 = arith.constant dense<0.000000e+00> : vector<4x64xf32>
    %105 = tpu.matmul %104, %103, %cst_28 {dimension_numbers = #tpu.dot_dimension_numbers<[1], [0], [0], [1], [0, 0, 1, 1], [], []>} : vector<4x32xbf16>, vector<32x64xbf16>, vector<4x64xf32> -> vector<4x64xf32>
    %c2 = arith.constant 2 : index
    %c0_29 = arith.constant 0 : index
    %106 = vector.load %arg6[%c2, %c0_29] : memref<8x64xf32, #tpu.memory_space<vmem>>, vector<1x64xf32>
    %107 = vector.broadcast %106 : vector<1x64xf32> to vector<4x64xf32>
    %108 = arith.addf %105, %107 : vector<4x64xf32>
    %cst_30 = arith.constant 0.000000e+00 : f32
    %109 = vector.broadcast %cst_30 : f32 to vector<4x64xf32>
    %110 = arith.subf %109, %108 : vector<4x64xf32>
    %111 = math.exp %110 : vector<4x64xf32>
    %cst_31 = arith.constant 1.000000e+00 : f32
    %112 = vector.broadcast %cst_31 : f32 to vector<4x64xf32>
    %113 = arith.addf %112, %111 : vector<4x64xf32>
    %cst_32 = arith.constant 1.000000e+00 : f32
    %114 = vector.broadcast %cst_32 : f32 to vector<4x64xf32>
    %115 = arith.divf %114, %113 : vector<4x64xf32>
    %116 = arith.mulf %94, %115 : vector<4x64xf32>
    %c416 = arith.constant 416 : index
    %c0_33 = arith.constant 0 : index
    %117 = vector.load %arg5[%c416, %c0_33] : memref<544x64xbf16, #tpu.memory_space<vmem>>, vector<64x32xbf16>
    %118 = arith.truncf %116 : vector<4x64xf32> to vector<4x64xbf16>
    %cst_34 = arith.constant dense<0.000000e+00> : vector<4x32xf32>
    %119 = tpu.matmul %118, %117, %cst_34 {dimension_numbers = #tpu.dot_dimension_numbers<[1], [0], [0], [1], [0, 0, 1, 1], [], []>} : vector<4x64xbf16>, vector<64x32xbf16>, vector<4x32xf32> -> vector<4x32xf32>
    %c3 = arith.constant 3 : index
    %c0_35 = arith.constant 0 : index
    %120 = vector.load %arg6[%c3, %c0_35] : memref<8x64xf32, #tpu.memory_space<vmem>>, vector<1x32xf32>
    %121 = vector.broadcast %120 : vector<1x32xf32> to vector<4x32xf32>
    %122 = arith.addf %119, %121 : vector<4x32xf32>
    %cst_36 = arith.constant 0.000000e+00 : f32
    %123 = vector.broadcast %cst_36 : f32 to vector<4x32xf32>
    %124 = arith.maximumf %122, %123 : vector<4x32xf32>
    %c480 = arith.constant 480 : index
    %c0_37 = arith.constant 0 : index
    %125 = vector.load %arg5[%c480, %c0_37] : memref<544x64xbf16, #tpu.memory_space<vmem>>, vector<32x32xbf16>
    %126 = arith.truncf %124 : vector<4x32xf32> to vector<4x32xbf16>
    %cst_38 = arith.constant dense<0.000000e+00> : vector<4x32xf32>
    %127 = tpu.matmul %126, %125, %cst_38 {dimension_numbers = #tpu.dot_dimension_numbers<[1], [0], [0], [1], [0, 0, 1, 1], [], []>} : vector<4x32xbf16>, vector<32x32xbf16>, vector<4x32xf32> -> vector<4x32xf32>
    %c4 = arith.constant 4 : index
    %c0_39 = arith.constant 0 : index
    %128 = vector.load %arg6[%c4, %c0_39] : memref<8x64xf32, #tpu.memory_space<vmem>>, vector<1x32xf32>
    %129 = vector.broadcast %128 : vector<1x32xf32> to vector<4x32xf32>
    %130 = arith.addf %127, %129 : vector<4x32xf32>
    %c512 = arith.constant 512 : index
    %c0_40 = arith.constant 0 : index
    %131 = vector.load %arg5[%c512, %c0_40] : memref<544x64xbf16, #tpu.memory_space<vmem>>, vector<32x8xbf16>
    %132 = arith.truncf %130 : vector<4x32xf32> to vector<4x32xbf16>
    %cst_41 = arith.constant dense<0.000000e+00> : vector<4x8xf32>
    %133 = tpu.matmul %132, %131, %cst_41 {dimension_numbers = #tpu.dot_dimension_numbers<[1], [0], [0], [1], [0, 0, 1, 1], [], []>} : vector<4x32xbf16>, vector<32x8xbf16>, vector<4x8xf32> -> vector<4x8xf32>
    %c5 = arith.constant 5 : index
    %c0_42 = arith.constant 0 : index
    %134 = vector.load %arg6[%c5, %c0_42] : memref<8x64xf32, #tpu.memory_space<vmem>>, vector<1x8xf32>
    %135 = vector.broadcast %134 : vector<1x8xf32> to vector<4x8xf32>
    %136 = arith.addf %133, %135 : vector<4x8xf32>
    %cst_43 = arith.constant dense<0xFF800000> : vector<4xf32>
    %137 = vector.multi_reduction <maximumf>, %136, %cst_43 [1] : vector<4x8xf32> to vector<4xf32>
    %138 = vector.shape_cast %137 : vector<4xf32> to vector<4x1xf32>
    %139 = vector.broadcast %138 : vector<4x1xf32> to vector<4x8xf32>
    %140 = arith.subf %136, %139 : vector<4x8xf32>
    %141 = math.exp %140 : vector<4x8xf32>
    %cst_44 = arith.constant dense<0.000000e+00> : vector<4xf32>
    %142 = vector.multi_reduction <add>, %141, %cst_44 [1] : vector<4x8xf32> to vector<4xf32>
    %143 = vector.shape_cast %142 : vector<4xf32> to vector<4x1xf32>
    %144 = tpu.reciprocal %143 {approx = true} : vector<4x1xf32> -> vector<4x1xf32>
    %145 = vector.broadcast %144 : vector<4x1xf32> to vector<4x8xf32>
    %146 = arith.mulf %141, %145 : vector<4x8xf32>
    %cst_45 = arith.constant 8.000000e+00 : f32
    %147 = vector.broadcast %cst_45 : f32 to vector<4x8xf32>
    %148 = arith.mulf %147, %146 : vector<4x8xf32>
    %cst_46 = arith.constant 1.000000e+00 : f32
    %149 = vector.broadcast %cst_46 : f32 to vector<4x8xf32>
    %150 = arith.subf %149, %148 : vector<4x8xf32>
    %151 = arith.truncf %150 : vector<4x8xf32> to vector<4x8xbf16>
    %cst_47 = arith.constant dense<0.000000e+00> : vector<4x32xf32>
    %152 = tpu.matmul %151, %131, %cst_47 {dimension_numbers = #tpu.dot_dimension_numbers<[1], [1], [0], [0], [0, 0, 1, 0], [], []>} : vector<4x8xbf16>, vector<32x8xbf16>, vector<4x32xf32> -> vector<4x32xf32>
    %cst_48 = arith.constant 0.000000e+00 : f32
    %153 = vector.broadcast %cst_48 : f32 to vector<4x32xf32>
    %154 = arith.subf %153, %152 : vector<4x32xf32>
    %155 = arith.addf %130, %154 : vector<4x32xf32>
    %156 = arith.truncf %154 : vector<4x32xf32> to vector<4x32xbf16>
    %cst_49 = arith.constant dense<0.000000e+00> : vector<4x8xf32>
    %157 = tpu.matmul %156, %131, %cst_49 {dimension_numbers = #tpu.dot_dimension_numbers<[1], [0], [0], [1], [0, 0, 1, 1], [], []>} : vector<4x32xbf16>, vector<32x8xbf16>, vector<4x8xf32> -> vector<4x8xf32>
    %158 = arith.addf %136, %157 : vector<4x8xf32>
    %cst_50 = arith.constant dense<0xFF800000> : vector<4xf32>
    %159 = vector.multi_reduction <maximumf>, %130, %cst_50 [1] : vector<4x32xf32> to vector<4xf32>
    %160 = vector.shape_cast %159 : vector<4xf32> to vector<4x1xf32>
    %161 = vector.broadcast %160 : vector<4x1xf32> to vector<4x32xf32>
    %162 = arith.subf %130, %161 : vector<4x32xf32>
    %163 = math.exp %162 : vector<4x32xf32>
    %cst_51 = arith.constant dense<0.000000e+00> : vector<4xf32>
    %164 = vector.multi_reduction <add>, %163, %cst_51 [1] : vector<4x32xf32> to vector<4xf32>
    %165 = vector.shape_cast %164 : vector<4xf32> to vector<4x1xf32>
    %166 = vector.broadcast %160 : vector<4x1xf32> to vector<4x32xf32>
    %167 = arith.subf %130, %166 : vector<4x32xf32>
    %168 = math.log %165 : vector<4x1xf32>
    %169 = vector.broadcast %168 : vector<4x1xf32> to vector<4x32xf32>
    %170 = arith.subf %167, %169 : vector<4x32xf32>
    %171 = vector.broadcast %165 : vector<4x1xf32> to vector<4x32xf32>
    %172 = arith.divf %163, %171 : vector<4x32xf32>
    %cst_52 = arith.constant dense<0xFF800000> : vector<4xf32>
    %173 = vector.multi_reduction <maximumf>, %155, %cst_52 [1] : vector<4x32xf32> to vector<4xf32>
    %174 = vector.shape_cast %173 : vector<4xf32> to vector<4x1xf32>
    %175 = vector.broadcast %174 : vector<4x1xf32> to vector<4x32xf32>
    %176 = arith.subf %155, %175 : vector<4x32xf32>
    %177 = vector.broadcast %174 : vector<4x1xf32> to vector<4x32xf32>
    %178 = arith.subf %155, %177 : vector<4x32xf32>
    %179 = math.exp %178 : vector<4x32xf32>
    %cst_53 = arith.constant dense<0.000000e+00> : vector<4xf32>
    %180 = vector.multi_reduction <add>, %179, %cst_53 [1] : vector<4x32xf32> to vector<4xf32>
    %181 = vector.shape_cast %180 : vector<4xf32> to vector<4x1xf32>
    %182 = math.log %181 : vector<4x1xf32>
    %183 = vector.broadcast %182 : vector<4x1xf32> to vector<4x32xf32>
    %184 = arith.subf %176, %183 : vector<4x32xf32>
    %185 = arith.subf %170, %184 : vector<4x32xf32>
    %186 = arith.mulf %172, %185 : vector<4x32xf32>
    %187 = vector.shape_cast %186 : vector<4x32xf32> to vector<1x4x32xf32>
    %cst_54 = arith.constant dense<0.000000e+00> : vector<1xf32>
    %188 = vector.multi_reduction <add>, %187, %cst_54 [1, 2] : vector<1x4x32xf32> to vector<1xf32>
    %189 = vector.shape_cast %188 : vector<1xf32> to vector<1x1x1xf32>
    %190 = vector.extract %189[0, 0, 0] : f32 from vector<1x1x1xf32>
    %c0_55 = arith.constant 0 : index
    %c0_56 = arith.constant 0 : index
    %191 = vector.load %arg4[%c0_55, %c0_56] : memref<4x1xi32, #tpu.memory_space<vmem>>, vector<4x1xi32>
    %192 = tpu.iota {dimensions = array<i32: 1>} : vector<4x8xi32>
    %cst_57 = arith.constant dense<0xFF800000> : vector<4xf32>
    %193 = vector.multi_reduction <maximumf>, %136, %cst_57 [1] : vector<4x8xf32> to vector<4xf32>
    %194 = vector.shape_cast %193 : vector<4xf32> to vector<4x1xf32>
    %195 = vector.broadcast %194 : vector<4x1xf32> to vector<4x8xf32>
    %196 = arith.cmpf oeq, %136, %195 : vector<4x8xf32>
    %c2147483647_i32 = arith.constant 2147483647 : i32
    %197 = vector.broadcast %c2147483647_i32 : i32 to vector<4x8xi32>
    %198 = arith.select %196, %192, %197 : vector<4x8xi1>, vector<4x8xi32>
    %cst_58 = arith.constant dense<2147483647> : vector<4xi32>
    %199 = vector.multi_reduction <minsi>, %198, %cst_58 [1] : vector<4x8xi32> to vector<4xi32>
    %200 = vector.shape_cast %199 : vector<4xi32> to vector<4x1xi32>
    %201 = arith.cmpi ne, %200, %191 : vector<4x1xi32>
    %202 = arith.extui %201 : vector<4x1xi1> to vector<4x1xi32>
    %203 = arith.sitofp %202 : vector<4x1xi32> to vector<4x1xf32>
    %204 = vector.shape_cast %203 : vector<4x1xf32> to vector<1x4x1xf32>
    %cst_59 = arith.constant dense<0.000000e+00> : vector<1xf32>
    %205 = vector.multi_reduction <add>, %204, %cst_59 [1, 2] : vector<1x4x1xf32> to vector<1xf32>
    %206 = vector.shape_cast %205 : vector<1xf32> to vector<1x1x1xf32>
    %207 = vector.extract %206[0, 0, 0] : f32 from vector<1x1x1xf32>
    %208 = tpu.iota {dimensions = array<i32: 1>} : vector<4x8xi32>
    %cst_60 = arith.constant dense<0xFF800000> : vector<4xf32>
    %209 = vector.multi_reduction <maximumf>, %158, %cst_60 [1] : vector<4x8xf32> to vector<4xf32>
    %210 = vector.shape_cast %209 : vector<4xf32> to vector<4x1xf32>
    %211 = vector.broadcast %210 : vector<4x1xf32> to vector<4x8xf32>
    %212 = arith.cmpf oeq, %158, %211 : vector<4x8xf32>
    %c2147483647_i32_61 = arith.constant 2147483647 : i32
    %213 = vector.broadcast %c2147483647_i32_61 : i32 to vector<4x8xi32>
    %214 = arith.select %212, %208, %213 : vector<4x8xi1>, vector<4x8xi32>
    %cst_62 = arith.constant dense<2147483647> : vector<4xi32>
    %215 = vector.multi_reduction <minsi>, %214, %cst_62 [1] : vector<4x8xi32> to vector<4xi32>
    %216 = vector.shape_cast %215 : vector<4xi32> to vector<4x1xi32>
    %217 = arith.cmpi eq, %216, %191 : vector<4x1xi32>
    %218 = arith.extui %217 : vector<4x1xi1> to vector<4x1xi32>
    %219 = arith.sitofp %218 : vector<4x1xi32> to vector<4x1xf32>
    %220 = vector.shape_cast %219 : vector<4x1xf32> to vector<1x4x1xf32>
    %cst_63 = arith.constant dense<0.000000e+00> : vector<1xf32>
    %221 = vector.multi_reduction <add>, %220, %cst_63 [1, 2] : vector<1x4x1xf32> to vector<1xf32>
    %222 = vector.shape_cast %221 : vector<1xf32> to vector<1x1x1xf32>
    %223 = vector.extract %222[0, 0, 0] : f32 from vector<1x1x1xf32>
    %cst_64 = arith.constant 2.500000e-01 : f32
    %224 = arith.mulf %190, %cst_64 : f32
    %225 = arith.addf %207, %223 : f32
    %cst_65 = arith.constant 2.500000e-01 : f32
    %226 = arith.mulf %225, %cst_65 : f32
    %c0_i32 = arith.constant 0 : i32
    %227 = arith.cmpi eq, %arg0, %c0_i32 : i32
    %228 = arith.extui %227 : i1 to i32
    %c0_i32_66 = arith.constant 0 : i32
    %229 = arith.cmpi ne, %228, %c0_i32_66 : i32
    scf.if %229 {
      %cst_76 = arith.constant 0.000000e+00 : f32
      %c0_77 = arith.constant 0 : index
      %244 = memref.load %arg7[%c0_77] : memref<4xf32, #tpu.memory_space<smem>>
      memref.store %cst_76, %arg7[%c0_77] : memref<4xf32, #tpu.memory_space<smem>>
      %cst_78 = arith.constant 0.000000e+00 : f32
      %c1_79 = arith.constant 1 : index
      %245 = memref.load %arg7[%c1_79] : memref<4xf32, #tpu.memory_space<smem>>
      memref.store %cst_78, %arg7[%c1_79] : memref<4xf32, #tpu.memory_space<smem>>
      %cst_80 = arith.constant 0.000000e+00 : f32
      %c2_81 = arith.constant 2 : index
      %246 = memref.load %arg7[%c2_81] : memref<4xf32, #tpu.memory_space<smem>>
      memref.store %cst_80, %arg7[%c2_81] : memref<4xf32, #tpu.memory_space<smem>>
      %cst_82 = arith.constant 0.000000e+00 : f32
      %c3_83 = arith.constant 3 : index
      %247 = memref.load %arg7[%c3_83] : memref<4xf32, #tpu.memory_space<smem>>
      memref.store %cst_82, %arg7[%c3_83] : memref<4xf32, #tpu.memory_space<smem>>
    } else {
    }
    %c0_67 = arith.constant 0 : index
    %230 = memref.load %arg7[%c0_67] : memref<4xf32, #tpu.memory_space<smem>>
    %cst_68 = arith.constant 7.500000e-01 : f32
    %231 = arith.mulf %cst_68, %224 : f32
    %232 = arith.addf %226, %231 : f32
    %233 = arith.addf %230, %232 : f32
    %c0_69 = arith.constant 0 : index
    %234 = memref.load %arg7[%c0_69] : memref<4xf32, #tpu.memory_space<smem>>
    memref.store %233, %arg7[%c0_69] : memref<4xf32, #tpu.memory_space<smem>>
    %c1_70 = arith.constant 1 : index
    %235 = memref.load %arg7[%c1_70] : memref<4xf32, #tpu.memory_space<smem>>
    %236 = arith.addf %235, %226 : f32
    %c1_71 = arith.constant 1 : index
    %237 = memref.load %arg7[%c1_71] : memref<4xf32, #tpu.memory_space<smem>>
    memref.store %236, %arg7[%c1_71] : memref<4xf32, #tpu.memory_space<smem>>
    %c2_72 = arith.constant 2 : index
    %238 = memref.load %arg7[%c2_72] : memref<4xf32, #tpu.memory_space<smem>>
    %239 = arith.addf %238, %224 : f32
    %c2_73 = arith.constant 2 : index
    %240 = memref.load %arg7[%c2_73] : memref<4xf32, #tpu.memory_space<smem>>
    memref.store %239, %arg7[%c2_73] : memref<4xf32, #tpu.memory_space<smem>>
    %c3_74 = arith.constant 3 : index
    %241 = memref.load %arg7[%c3_74] : memref<4xf32, #tpu.memory_space<smem>>
    %242 = arith.addf %241, %224 : f32
    %c3_75 = arith.constant 3 : index
    %243 = memref.load %arg7[%c3_75] : memref<4xf32, #tpu.memory_space<smem>>
    memref.store %242, %arg7[%c3_75] : memref<4xf32, #tpu.memory_space<smem>>
    return
  }
  func.func @transform_0(%arg0: i32) -> (i32, i32) {
    %c0_i32 = arith.constant 0 : i32
    %c0_i32_0 = arith.constant 0 : i32
    return %arg0, %c0_i32 : i32, i32
  }
  func.func @transform_1(%arg0: i32) -> (i32, i32) {
    %c0_i32 = arith.constant 0 : i32
    %c0_i32_0 = arith.constant 0 : i32
    return %arg0, %c0_i32 : i32, i32
  }
  func.func @transform_2(%arg0: i32) -> (i32, i32) {
    %c0_i32 = arith.constant 0 : i32
    %c0_i32_0 = arith.constant 0 : i32
    return %arg0, %c0_i32 : i32, i32
  }
  func.func @transform_3(%arg0: i32) -> (i32, i32) {
    %c0_i32 = arith.constant 0 : i32
    %c0_i32_0 = arith.constant 0 : i32
    return %arg0, %c0_i32 : i32, i32
  }
  func.func @transform_4(%arg0: i32) -> (i32, i32) {
    %c0_i32 = arith.constant 0 : i32
    %c0_i32_0 = arith.constant 0 : i32
    %c0_i32_1 = arith.constant 0 : i32
    return %c0_i32, %c0_i32_0 : i32, i32
  }
  func.func @transform_5(%arg0: i32) -> (i32, i32) {
    %c0_i32 = arith.constant 0 : i32
    %c0_i32_0 = arith.constant 0 : i32
    %c0_i32_1 = arith.constant 0 : i32
    return %c0_i32, %c0_i32_0 : i32, i32
  }
  func.func @transform_6(%arg0: i32) -> i32 {
    %c0_i32 = arith.constant 0 : i32
    %c0_i32_0 = arith.constant 0 : i32
    return %c0_i32 : i32
  }
}

</mosaic_0001>

<llo_original>
// kernel: mml_base_vta_late_forward.1
$region0: #{mml_base_vta_late_forward.1}
  #allocation0 [shape = 'u32[]', space=smem, size = 0x4, offset = 0x4, fixed_abs, tag = 'smem constant byte address 0x4 - core index']
  #allocation1 [shape = 'u32[144,128]{1,0:T(1,128)}', space=vmem, size = 0x12000, scoped, tag = 'internal scratch']
  %s0 = inlined_call_operand.vmem [shape: s32[4,8], index: 0, kind: input, shape index: {}]
  %s1 = inlined_call_operand.vmem [shape: f32[4,8], index: 1, kind: input, shape index: {}]
  %s2 = inlined_call_operand.vmem [shape: f32[4,256], index: 2, kind: input, shape index: {}]
  %s3 = inlined_call_operand.vmem [shape: s32[4,1], index: 3, kind: input, shape index: {}]
  %s4 = inlined_call_operand.vmem [shape: bf16[544,64], index: 4, kind: input, shape index: {}]
  %s5 = inlined_call_operand.vmem [shape: f32[8,64], index: 5, kind: input, shape index: {}]
  %s6 = inlined_call_operand.vmem [shape: f32[4], index: 6, kind: output, shape index: {}]
  %s7 = sld [smem:[#allocation0]]
  $region38: #{mml_base_vta_late_forward.1} parent=0
    _
  %s9 = ssub.s32 1, %s7
  %s10 = scalar_select 0, %s9, %s7
  $region1: #{mml_base_vta_late_forward.1} parent=0
    #allocation2 [shape = 'u8[512]{0}', space=smem, size = 0x200, scoped, tag = 'output window, operand 0, single buffered']
    #allocation3 [shape = 's32[1]{0}', space=sflag, size = 0x4, scoped, tag = 'scoped memory for mml_base_vta_late_forward.1']
    %11 = vsyncpa [#allocation3], 0
    // Predicated region
    $region2: #{mml_base_vta_late_forward.1} parent=1 // pred_check
      _
    $region3: #{mml_base_vta_late_forward.1} parent=1 // pred_check_branch
      %13 = sbr.rel (0) target = $region5
    $region4: #{mml_base_vta_late_forward.1} parent=1 // pred_region
      _
    $region5: #{mml_base_vta_late_forward.1} parent=1 // pred_fallthru
      _
    // Predicated region
    $region6: #{mml_base_vta_late_forward.1} parent=1 // pred_check
      _
    $region7: #{mml_base_vta_late_forward.1} parent=1 // pred_check_branch
      %15 = sbr.rel (0) target = $region9
    $region8: #{mml_base_vta_late_forward.1} parent=1 // pred_region
      _
    $region9: #{mml_base_vta_late_forward.1} parent=1 // pred_fallthru
      _
    // Predicated region
    $region10: #{mml_base_vta_late_forward.1} parent=1 // pred_check
      _
    $region11: #{mml_base_vta_late_forward.1} parent=1 // pred_check_branch
      %17 = sbr.rel (0) target = $region13
    $region12: #{mml_base_vta_late_forward.1} parent=1 // pred_region
      _
    $region13: #{mml_base_vta_late_forward.1} parent=1 // pred_fallthru
      _
    // Predicated region
    $region14: #{mml_base_vta_late_forward.1} parent=1 // pred_check
      _
    $region15: #{mml_base_vta_late_forward.1} parent=1 // pred_check_branch
      %19 = sbr.rel (0) target = $region17
    $region16: #{mml_base_vta_late_forward.1} parent=1 // pred_region
      _
    $region17: #{mml_base_vta_late_forward.1} parent=1 // pred_fallthru
      _
    // Predicated region
    $region18: #{mml_base_vta_late_forward.1} parent=1 // pred_check
      _
    $region19: #{mml_base_vta_late_forward.1} parent=1 // pred_check_branch
      %21 = sbr.rel (0) target = $region21
    $region20: #{mml_base_vta_late_forward.1} parent=1 // pred_region
      _
    $region21: #{mml_base_vta_late_forward.1} parent=1 // pred_fallthru
      _
    // Predicated region
    $region22: #{mml_base_vta_late_forward.1} parent=1 // pred_check
      _
    $region23: #{mml_base_vta_late_forward.1} parent=1 // pred_check_branch
      %23 = sbr.rel (0) target = $region25
    $region24: #{mml_base_vta_late_forward.1} parent=1 // pred_region
      _
    $region25: #{mml_base_vta_late_forward.1} parent=1 // pred_fallthru
      _
    %v25 = vld [vmem:[%s0] sm:$0xf]
    %v26 = vld [vmem:[%s1] sm:$0xf]
    %v27 = vlaneseq
    %v28 = vand.u32 %v27, 127
    %29 = vset.pattern.permute.xlu0 0
    %30 = vperm.xlu0 %29, %v25
    %v31 = vpop.permute.xlu0 %30
    %vm32 = vcmp.eq.s32.totalorder %v28, %v31
    %34 = vset.pattern.permute.xlu0 0
    %35 = vperm.xlu0 %34, %v26
    %v36 = vpop.permute.xlu0 %35
    %v38 = vsel %vm32, %v36, 0.0
    %v39 = vadd.f32 %v38, 0.0
    %40 = vset.pattern.permute.xlu0 1
    %41 = vperm.xlu0 %40, %v25
    %v42 = vpop.permute.xlu0 %41
    %vm43 = vcmp.eq.s32.totalorder %v28, %v42
    %44 = vset.pattern.permute.xlu0 1
    %45 = vperm.xlu0 %44, %v26
    %v46 = vpop.permute.xlu0 %45
    %v48 = vsel %vm43, %v46, 0.0
    %v49 = vadd.f32 %v39, %v48
    %50 = vset.pattern.permute.xlu0 2
    %51 = vperm.xlu0 %50, %v25
    %v52 = vpop.permute.xlu0 %51
    %vm53 = vcmp.eq.s32.totalorder %v28, %v52
    %54 = vset.pattern.permute.xlu0 2
    %55 = vperm.xlu0 %54, %v26
    %v56 = vpop.permute.xlu0 %55
    %v58 = vsel %vm53, %v56, 0.0
    %v59 = vadd.f32 %v49, %v58
    %60 = vset.pattern.permute.xlu0 3
    %61 = vperm.xlu0 %60, %v25
    %v62 = vpop.permute.xlu0 %61
    %vm63 = vcmp.eq.s32.totalorder %v28, %v62
    %64 = vset.pattern.permute.xlu0 3
    %65 = vperm.xlu0 %64, %v26
    %v66 = vpop.permute.xlu0 %65
    %v68 = vsel %vm63, %v66, 0.0
    %v69 = vadd.f32 %v59, %v68
    %70 = vset.pattern.permute.xlu0 4
    %71 = vperm.xlu0 %70, %v25
    %v72 = vpop.permute.xlu0 %71
    %vm73 = vcmp.eq.s32.totalorder %v28, %v72
    %74 = vset.pattern.permute.xlu0 4
    %75 = vperm.xlu0 %74, %v26
    %v76 = vpop.permute.xlu0 %75
    %v78 = vsel %vm73, %v76, 0.0
    %v79 = vadd.f32 %v69, %v78
    %80 = vset.pattern.permute.xlu0 5
    %81 = vperm.xlu0 %80, %v25
    %v82 = vpop.permute.xlu0 %81
    %vm83 = vcmp.eq.s32.totalorder %v28, %v82
    %84 = vset.pattern.permute.xlu0 5
    %85 = vperm.xlu0 %84, %v26
    %v86 = vpop.permute.xlu0 %85
    %v88 = vsel %vm83, %v86, 0.0
    %v89 = vadd.f32 %v79, %v88
    %90 = vset.pattern.permute.xlu0 6
    %91 = vperm.xlu0 %90, %v25
    %v92 = vpop.permute.xlu0 %91
    %vm93 = vcmp.eq.s32.totalorder %v28, %v92
    %94 = vset.pattern.permute.xlu0 6
    %95 = vperm.xlu0 %94, %v26
    %v96 = vpop.permute.xlu0 %95
    %v98 = vsel %vm93, %v96, 0.0
    %v99 = vadd.f32 %v89, %v98
    %100 = vset.pattern.permute.xlu0 7
    %101 = vperm.xlu0 %100, %v25
    %v102 = vpop.permute.xlu0 %101
    %vm103 = vcmp.eq.s32.totalorder %v28, %v102
    %104 = vset.pattern.permute.xlu0 7
    %105 = vperm.xlu0 %104, %v26
    %v106 = vpop.permute.xlu0 %105
    %v108 = vsel %vm103, %v106, 0.0
    %v109 = vadd.f32 %v99, %v108
    %vm110 = vcmask 60416
    %v111 = vsel %vm110, %v26, 0.0
    %112 = vadd.xlane.f32.xlu0 %v111
    %v113 = vpop.xlane.xlu0 %112
    %v114 = vmax.f32 %v113, 1.0
    %v115 = vrcp.pop %v114
    %v116 = vmul.f32 1.0, %v115
    %v117 = vld [vmem:[%s4] sm:$0xf]
    %v118 = vld [vmem:[%s4 + $0x4] sm:$0xf]
    %v119 = vld [vmem:[%s4 + $0x8] sm:$0xf]
    %v120 = vld [vmem:[%s4 + $0xc] sm:$0xf]
    %v121 = vld [vmem:[%s4 + $0x10] sm:$0xf]
    %v122 = vld [vmem:[%s4 + $0x14] sm:$0xf]
    %v123 = vld [vmem:[%s4 + $0x18] sm:$0xf]
    %v124 = vld [vmem:[%s4 + $0x1c] sm:$0xf]
    %v125 = vpack.c.bf16 %v109, %v109
    %v134 = vunpack.c.l.b16 %v117
    %v135 = vunpack.c.l.b16 %v118
    %v136 = vunpack.c.l.b16 %v119
    %v137 = vunpack.c.l.b16 %v120
    %v138 = vunpack.c.l.b16 %v121
    %v139 = vunpack.c.l.b16 %v122
    %v140 = vunpack.c.l.b16 %v123
    %v141 = vunpack.c.l.b16 %v124
    %v142 = vpack.c.b16 %v135, %v134
    %v143 = vpack.c.b16 %v137, %v136
    %v144 = vpack.c.b16 %v139, %v138
    %v145 = vpack.c.b16 %v141, %v140
    %vm150 = vcmask 523264
    %v152 = vsel %vm150, %v125, 0
    %154 = vmatprep.subr.bf16.mxu0 0
    %155 = vmatpush1.bf16.msra.mxu0 %v142
    %156 = vmatprep.subr.bf16.mxu0 0
    %157 = vmatpush1.bf16.msra.mxu0 %v143
    %158 = vmatprep.subr.bf16.mxu0 0
    %159 = vmatpush1.bf16.msra.mxu0 %v144
    %160 = vmatprep.subr.bf16.mxu0 0
    %161 = vmatpush1.bf16.msra.mxu0 %v145
    %162 = vmatprep.subr.bf16.mxu0 0
    %163 = vmatpush1.bf16.msra.mxu0 0
    %164 = vmatprep.subr.bf16.mxu0 0
    %165 = vmatpush1.bf16.msra.mxu0 0
    %166 = vmatprep.subr.bf16.mxu0 0
    %167 = vmatpush1.bf16.msra.mxu0 0
    %168 = vmatprep.subr.bf16.mxu0 0
    %169 = vmatpush1.bf16.msra.mxu0 0
    %170 = vmatprep.subr.bf16.mxu0 0
    %171 = vmatpush1.bf16.msra.mxu0 0
    %172 = vmatprep.subr.bf16.mxu0 0
    %173 = vmatpush1.bf16.msra.mxu0 0
    %174 = vmatprep.subr.bf16.mxu0 0
    %175 = vmatpush1.bf16.msra.mxu0 0
    %176 = vmatprep.subr.bf16.mxu0 0
    %177 = vmatpush1.bf16.msra.mxu0 0
    %178 = vmatprep.subr.bf16.mxu0 0
    %179 = vmatpush1.bf16.msra.mxu0 0
    %180 = vmatprep.subr.bf16.mxu0 0
    %181 = vmatpush1.bf16.msra.mxu0 0
    %182 = vmatprep.subr.bf16.mxu0 0
    %183 = vmatpush1.bf16.msra.mxu0 0
    %184 = vmatprep.subr.bf16.mxu0 0
    %185 = vmatpush1.bf16.msra.mxu0 0
    %186 = vmatprep.mubr.bf16.mxu0 0
    %187 = vmatmul.mubr.bf16.gmra.mrb[0].mxu0 %v152
    %v188 = vpop.f32.mrb[0].mxu0
    %v189 = vadd.f32 0.0, %v188
    %v190 = vpop.f32.mrb[0].mxu0
    %v191 = vpop.f32.mrb[0].mxu0
    %v192 = vpop.f32.mrb[0].mxu0
    %193 = vdwg.mxu0
    %v194 = vmul.f32 %v189, %v116
    %v195 = vld [vmem:[%s2] sm:$0xff]
    %v196 = vld [vmem:[%s4 + $0x20] sm:$0xf]
    %v197 = vld [vmem:[%s4 + $0x24] sm:$0xf]
    %v198 = vld [vmem:[%s4 + $0x28] sm:$0xf]
    %v199 = vld [vmem:[%s4 + $0x2c] sm:$0xf]
    %v200 = vld [vmem:[%s4 + $0x30] sm:$0xf]
    %v201 = vld [vmem:[%s4 + $0x34] sm:$0xf]
    %v202 = vld [vmem:[%s4 + $0x38] sm:$0xf]
    %v203 = vld [vmem:[%s4 + $0x3c] sm:$0xf]
    %v204 = vld [vmem:[%s4 + $0x40] sm:$0xf]
    %v205 = vld [vmem:[%s4 + $0x44] sm:$0xf]
    %v206 = vld [vmem:[%s4 + $0x48] sm:$0xf]
    %v207 = vld [vmem:[%s4 + $0x4c] sm:$0xf]
    %v208 = vld [vmem:[%s4 + $0x50] sm:$0xf]
    %v209 = vld [vmem:[%s4 + $0x54] sm:$0xf]
    %v210 = vld [vmem:[%s4 + $0x58] sm:$0xf]
    %v211 = vld [vmem:[%s4 + $0x5c] sm:$0xf]
    %v212 = vld [vmem:[%s4 + $0x60] sm:$0xf]
    %v213 = vld [vmem:[%s4 + $0x64] sm:$0xf]
    %v214 = vld [vmem:[%s4 + $0x68] sm:$0xf]
    %v215 = vld [vmem:[%s4 + $0x6c] sm:$0xf]
    %v216 = vld [vmem:[%s4 + $0x70] sm:$0xf]
    %v217 = vld [vmem:[%s4 + $0x74] sm:$0xf]
    %v218 = vld [vmem:[%s4 + $0x78] sm:$0xf]
    %v219 = vld [vmem:[%s4 + $0x7c] sm:$0xf]
    %v220 = vld [vmem:[%s4 + $0x80] sm:$0xf]
    %v221 = vld [vmem:[%s4 + $0x84] sm:$0xf]
    %v222 = vld [vmem:[%s4 + $0x88] sm:$0xf]
    %v223 = vld [vmem:[%s4 + $0x8c] sm:$0xf]
    %v224 = vld [vmem:[%s4 + $0x90] sm:$0xf]
    %v225 = vld [vmem:[%s4 + $0x94] sm:$0xf]
    %v226 = vld [vmem:[%s4 + $0x98] sm:$0xf]
    %v227 = vld [vmem:[%s4 + $0x9c] sm:$0xf]
    %v229 = vcombine.high %v195, %v195
    %v231 = vpack.c.bf16 %v195, %v195
    %v232 = vpack.c.bf16 %v229, %v229
    %v265 = vunpack.c.l.b16 %v196
    %v266 = vunpack.c.l.b16 %v197
    %v267 = vunpack.c.l.b16 %v198
    %v268 = vunpack.c.l.b16 %v199
    %v269 = vunpack.c.l.b16 %v200
    %v270 = vunpack.c.l.b16 %v201
    %v271 = vunpack.c.l.b16 %v202
    %v272 = vunpack.c.l.b16 %v203
    %v273 = vunpack.c.l.b16 %v204
    %v274 = vunpack.c.l.b16 %v205
    %v275 = vunpack.c.l.b16 %v206
    %v276 = vunpack.c.l.b16 %v207
    %v277 = vunpack.c.l.b16 %v208
    %v278 = vunpack.c.l.b16 %v209
    %v279 = vunpack.c.l.b16 %v210
    %v280 = vunpack.c.l.b16 %v211
    %v281 = vunpack.c.l.b16 %v212
    %v282 = vunpack.c.l.b16 %v213
    %v283 = vunpack.c.l.b16 %v214
    %v284 = vunpack.c.l.b16 %v215
    %v285 = vunpack.c.l.b16 %v216
    %v286 = vunpack.c.l.b16 %v217
    %v287 = vunpack.c.l.b16 %v218
    %v288 = vunpack.c.l.b16 %v219
    %v289 = vunpack.c.l.b16 %v220
    %v290 = vunpack.c.l.b16 %v221
    %v291 = vunpack.c.l.b16 %v222
    %v292 = vunpack.c.l.b16 %v223
    %v293 = vunpack.c.l.b16 %v224
    %v294 = vunpack.c.l.b16 %v225
    %v295 = vunpack.c.l.b16 %v226
    %v296 = vunpack.c.l.b16 %v227
    %v297 = vpack.c.b16 %v266, %v265
    %v298 = vpack.c.b16 %v268, %v267
    %v299 = vpack.c.b16 %v270, %v269
    %v300 = vpack.c.b16 %v272, %v271
    %v301 = vpack.c.b16 %v274, %v273
    %v302 = vpack.c.b16 %v276, %v275
    %v303 = vpack.c.b16 %v278, %v277
    %v304 = vpack.c.b16 %v280, %v279
    %v305 = vpack.c.b16 %v282, %v281
    %v306 = vpack.c.b16 %v284, %v283
    %v307 = vpack.c.b16 %v286, %v285
    %v308 = vpack.c.b16 %v288, %v287
    %v309 = vpack.c.b16 %v290, %v289
    %v310 = vpack.c.b16 %v292, %v291
    %v311 = vpack.c.b16 %v294, %v293
    %v312 = vpack.c.b16 %v296, %v295
    %329 = vmatprep.subr.bf16.mxu0 0
    %330 = vmatpush1.bf16.msra.mxu0 %v297
    %331 = vmatprep.subr.bf16.mxu0 0
    %332 = vmatpush1.bf16.msra.mxu0 %v298
    %333 = vmatprep.subr.bf16.mxu0 0
    %334 = vmatpush1.bf16.msra.mxu0 %v299
    %335 = vmatprep.subr.bf16.mxu0 0
    %336 = vmatpush1.bf16.msra.mxu0 %v300
    %337 = vmatprep.subr.bf16.mxu0 0
    %338 = vmatpush1.bf16.msra.mxu0 %v301
    %339 = vmatprep.subr.bf16.mxu0 0
    %340 = vmatpush1.bf16.msra.mxu0 %v302
    %341 = vmatprep.subr.bf16.mxu0 0
    %342 = vmatpush1.bf16.msra.mxu0 %v303
    %343 = vmatprep.subr.bf16.mxu0 0
    %344 = vmatpush1.bf16.msra.mxu0 %v304
    %345 = vmatprep.subr.bf16.mxu0 0
    %346 = vmatpush1.bf16.msra.mxu0 %v305
    %347 = vmatprep.subr.bf16.mxu0 0
    %348 = vmatpush1.bf16.msra.mxu0 %v306
    %349 = vmatprep.subr.bf16.mxu0 0
    %350 = vmatpush1.bf16.msra.mxu0 %v307
    %351 = vmatprep.subr.bf16.mxu0 0
    %352 = vmatpush1.bf16.msra.mxu0 %v308
    %353 = vmatprep.subr.bf16.mxu0 0
    %354 = vmatpush1.bf16.msra.mxu0 %v309
    %355 = vmatprep.subr.bf16.mxu0 0
    %356 = vmatpush1.bf16.msra.mxu0 %v310
    %357 = vmatprep.subr.bf16.mxu0 0
    %358 = vmatpush1.bf16.msra.mxu0 %v311
    %359 = vmatprep.subr.bf16.mxu0 0
    %360 = vmatpush1.bf16.msra.mxu0 %v312
    %361 = vmatprep.mubr.bf16.mxu0 %v232
    %362 = vmatmul.mubr.bf16.gmra.mrb[0].mxu0 %v231
    %v363 = vpop.f32.mrb[0].mxu0
    %v364 = vadd.f32 0.0, %v363
    %v365 = vpop.f32.mrb[0].mxu0
    %v366 = vpop.f32.mrb[0].mxu0
    %v367 = vpop.f32.mrb[0].mxu0
    %368 = vdwg.mxu0
    %370 = vrot.lane.b32.xlu0 %v364, 32
    %v371 = vpop.permute.xlu0 %370
    %vm373 = vcmask 261120
    %v374 = vsel %vm373, %v194, %v371
    %v375 = vld [vmem:[%s5] sm:$0x1]
    %v376 = vlaneseq
    %v377 = vshrl.u32 %v376, 7
    %v378 = vsub.s32 0, %v377
    %v379 = vrot.slane %v375, %v378
    %v380 = vadd.f32 %v374, %v379
    %v381 = vld [vmem:[%s4 + $0xa0] sm:$0xf]
    %v382 = vld [vmem:[%s4 + $0xa4] sm:$0xf]
    %v383 = vld [vmem:[%s4 + $0xa8] sm:$0xf]
    %v384 = vld [vmem:[%s4 + $0xac] sm:$0xf]
    %v385 = vld [vmem:[%s4 + $0xb0] sm:$0xf]
    %v386 = vld [vmem:[%s4 + $0xb4] sm:$0xf]
    %v387 = vld [vmem:[%s4 + $0xb8] sm:$0xf]
    %v388 = vld [vmem:[%s4 + $0xbc] sm:$0xf]
    %v389 = vpack.c.bf16 %v380, %v380
    %v390 = vld [vmem:[%s5 + $0x1] sm:$0x1]
    %v391 = vlaneseq
    %v392 = vshrl.u32 %v391, 7
    %v393 = vsub.s32 0, %v392
    %v394 = vrot.slane %v390, %v393
    %v403 = vunpack.c.l.b16 %v381
    %v404 = vunpack.c.l.b16 %v382
    %v405 = vunpack.c.l.b16 %v383
    %v406 = vunpack.c.l.b16 %v384
    %v407 = vunpack.c.l.b16 %v385
    %v408 = vunpack.c.l.b16 %v386
    %v409 = vunpack.c.l.b16 %v387
    %v410 = vunpack.c.l.b16 %v388
    %v411 = vpack.c.b16 %v404, %v403
    %v412 = vpack.c.b16 %v406, %v405
    %v413 = vpack.c.b16 %v408, %v407
    %v414 = vpack.c.b16 %v410, %v409
    %v420 = vsel %vm150, %v389, 0
    %422 = vmatprep.subr.bf16.mxu0 0
    %423 = vmatpush1.bf16.msra.mxu0 %v411
    %424 = vmatprep.subr.bf16.mxu0 0
    %425 = vmatpush1.bf16.msra.mxu0 %v412
    %426 = vmatprep.subr.bf16.mxu0 0
    %427 = vmatpush1.bf16.msra.mxu0 %v413
    %428 = vmatprep.subr.bf16.mxu0 0
    %429 = vmatpush1.bf16.msra.mxu0 %v414
    %430 = vmatprep.subr.bf16.mxu0 0
    %431 = vmatpush1.bf16.msra.mxu0 0
    %432 = vmatprep.subr.bf16.mxu0 0
    %433 = vmatpush1.bf16.msra.mxu0 0
    %434 = vmatprep.subr.bf16.mxu0 0
    %435 = vmatpush1.bf16.msra.mxu0 0
    %436 = vmatprep.subr.bf16.mxu0 0
    %437 = vmatpush1.bf16.msra.mxu0 0
    %438 = vmatprep.subr.bf16.mxu0 0
    %439 = vmatpush1.bf16.msra.mxu0 0
    %440 = vmatprep.subr.bf16.mxu0 0
    %441 = vmatpush1.bf16.msra.mxu0 0
    %442 = vmatprep.subr.bf16.mxu0 0
    %443 = vmatpush1.bf16.msra.mxu0 0
    %444 = vmatprep.subr.bf16.mxu0 0
    %445 = vmatpush1.bf16.msra.mxu0 0
    %446 = vmatprep.subr.bf16.mxu0 0
    %447 = vmatpush1.bf16.msra.mxu0 0
    %448 = vmatprep.subr.bf16.mxu0 0
    %449 = vmatpush1.bf16.msra.mxu0 0
    %450 = vmatprep.subr.bf16.mxu0 0
    %451 = vmatpush1.bf16.msra.mxu0 0
    %452 = vmatprep.subr.bf16.mxu0 0
    %453 = vmatpush1.bf16.msra.mxu0 0
    %454 = vmatprep.mubr.bf16.mxu0 0
    %455 = vmatmul.mubr.bf16.gmra.mrb[0].mxu0 %v420
    %v456 = vpop.f32.mrb[0].mxu0
    %v457 = vadd.f32 %v394, %v456
    %v458 = vpop.f32.mrb[0].mxu0
    %v459 = vpop.f32.mrb[0].mxu0
    %v460 = vpop.f32.mrb[0].mxu0
    %461 = vdwg.mxu0
    %v462 = vmax.f32 %v457, 0.0
    %v463 = vld [vmem:[%s4 + $0xc0] sm:$0xf]
    %v464 = vld [vmem:[%s4 + $0xc4] sm:$0xf]
    %v465 = vld [vmem:[%s4 + $0xc8] sm:$0xf]
    %v466 = vld [vmem:[%s4 + $0xcc] sm:$0xf]
    %v467 = vpack.c.bf16 %v462, %v462
    %v468 = vld [vmem:[%s5 + $0x2] sm:$0x1]
    %v469 = vlaneseq
    %v470 = vshrl.u32 %v469, 7
    %v471 = vsub.s32 0, %v470
    %v472 = vrot.slane %v468, %v471
    %v477 = vunpack.c.l.b16 %v463
    %v478 = vunpack.c.l.b16 %v464
    %v479 = vunpack.c.l.b16 %v465
    %v480 = vunpack.c.l.b16 %v466
    %v481 = vpack.c.b16 %v478, %v477
    %v482 = vpack.c.b16 %v480, %v479
    %v486 = vsel %vm373, %v467, 0
    %488 = vmatprep.subr.bf16.mxu0 0
    %489 = vmatpush1.bf16.msra.mxu0 %v481
    %490 = vmatprep.subr.bf16.mxu0 0
    %491 = vmatpush1.bf16.msra.mxu0 %v482
    %492 = vmatprep.subr.bf16.mxu0 0
    %493 = vmatpush1.bf16.msra.mxu0 0
    %494 = vmatprep.subr.bf16.mxu0 0
    %495 = vmatpush1.bf16.msra.mxu0 0
    %496 = vmatprep.subr.bf16.mxu0 0
    %497 = vmatpush1.bf16.msra.mxu0 0
    %498 = vmatprep.subr.bf16.mxu0 0
    %499 = vmatpush1.bf16.msra.mxu0 0
    %500 = vmatprep.subr.bf16.mxu0 0
    %501 = vmatpush1.bf16.msra.mxu0 0
    %502 = vmatprep.subr.bf16.mxu0 0
    %503 = vmatpush1.bf16.msra.mxu0 0
    %504 = vmatprep.subr.bf16.mxu0 0
    %505 = vmatpush1.bf16.msra.mxu0 0
    %506 = vmatprep.subr.bf16.mxu0 0
    %507 = vmatpush1.bf16.msra.mxu0 0
    %508 = vmatprep.subr.bf16.mxu0 0
    %509 = vmatpush1.bf16.msra.mxu0 0
    %510 = vmatprep.subr.bf16.mxu0 0
    %511 = vmatpush1.bf16.msra.mxu0 0
    %512 = vmatprep.subr.bf16.mxu0 0
    %513 = vmatpush1.bf16.msra.mxu0 0
    %514 = vmatprep.subr.bf16.mxu0 0
    %515 = vmatpush1.bf16.msra.mxu0 0
    %516 = vmatprep.subr.bf16.mxu0 0
    %517 = vmatpush1.bf16.msra.mxu0 0
    %518 = vmatprep.subr.bf16.mxu0 0
    %519 = vmatpush1.bf16.msra.mxu0 0
    %520 = vmatprep.mubr.bf16.mxu0 0
    %521 = vmatmul.mubr.bf16.gmra.mrb[0].mxu0 %v486
    %v522 = vpop.f32.mrb[0].mxu0
    %v523 = vadd.f32 %v472, %v522
    %v524 = vpop.f32.mrb[0].mxu0
    %v525 = vpop.f32.mrb[0].mxu0
    %v526 = vpop.f32.mrb[0].mxu0
    %527 = vdwg.mxu0
    %v528 = vsub.f32 0.0, %v523
    %v529 = vmul.f32 %v528, 1.442695
    %v530 = vpow.pop %v529
    %v531 = vadd.f32 %v530, 1.0
    %v532 = vrcp.pop %v531
    %v533 = vmul.f32 1.0, %v532
    %v534 = vmul.f32 %v380, %v533
    %v535 = vld [vmem:[%s4 + $0xd0] sm:$0xf]
    %v536 = vld [vmem:[%s4 + $0xd4] sm:$0xf]
    %v537 = vld [vmem:[%s4 + $0xd8] sm:$0xf]
    %v538 = vld [vmem:[%s4 + $0xdc] sm:$0xf]
    %v539 = vld [vmem:[%s4 + $0xe0] sm:$0xf]
    %v540 = vld [vmem:[%s4 + $0xe4] sm:$0xf]
    %v541 = vld [vmem:[%s4 + $0xe8] sm:$0xf]
    %v542 = vld [vmem:[%s4 + $0xec] sm:$0xf]
    %v543 = vpack.c.bf16 %v534, %v534
    %v544 = vld [vmem:[%s5 + $0x3] sm:$0x1]
    %v545 = vlaneseq
    %v546 = vshrl.u32 %v545, 7
    %v547 = vsub.s32 0, %v546
    %v548 = vrot.slane %v544, %v547
    %v557 = vunpack.c.l.b16 %v535
    %v558 = vunpack.c.l.b16 %v536
    %v559 = vunpack.c.l.b16 %v537
    %v560 = vunpack.c.l.b16 %v538
    %v561 = vunpack.c.l.b16 %v539
    %v562 = vunpack.c.l.b16 %v540
    %v563 = vunpack.c.l.b16 %v541
    %v564 = vunpack.c.l.b16 %v542
    %v565 = vpack.c.b16 %v558, %v557
    %v566 = vpack.c.b16 %v560, %v559
    %v567 = vpack.c.b16 %v562, %v561
    %v568 = vpack.c.b16 %v564, %v563
    %v574 = vsel %vm150, %v543, 0
    %576 = vmatprep.subr.bf16.mxu0 0
    %577 = vmatpush1.bf16.msra.mxu0 %v565
    %578 = vmatprep.subr.bf16.mxu0 0
    %579 = vmatpush1.bf16.msra.mxu0 %v566
    %580 = vmatprep.subr.bf16.mxu0 0
    %581 = vmatpush1.bf16.msra.mxu0 %v567
    %582 = vmatprep.subr.bf16.mxu0 0
    %583 = vmatpush1.bf16.msra.mxu0 %v568
    %584 = vmatprep.subr.bf16.mxu0 0
    %585 = vmatpush1.bf16.msra.mxu0 0
    %586 = vmatprep.subr.bf16.mxu0 0
    %587 = vmatpush1.bf16.msra.mxu0 0
    %588 = vmatprep.subr.bf16.mxu0 0
    %589 = vmatpush1.bf16.msra.mxu0 0
    %590 = vmatprep.subr.bf16.mxu0 0
    %591 = vmatpush1.bf16.msra.mxu0 0
    %592 = vmatprep.subr.bf16.mxu0 0
    %593 = vmatpush1.bf16.msra.mxu0 0
    %594 = vmatprep.subr.bf16.mxu0 0
    %595 = vmatpush1.bf16.msra.mxu0 0
    %596 = vmatprep.subr.bf16.mxu0 0
    %597 = vmatpush1.bf16.msra.mxu0 0
    %598 = vmatprep.subr.bf16.mxu0 0
    %599 = vmatpush1.bf16.msra.mxu0 0
    %600 = vmatprep.subr.bf16.mxu0 0
    %601 = vmatpush1.bf16.msra.mxu0 0
    %602 = vmatprep.subr.bf16.mxu0 0
    %603 = vmatpush1.bf16.msra.mxu0 0
    %604 = vmatprep.subr.bf16.mxu0 0
    %605 = vmatpush1.bf16.msra.mxu0 0
    %606 = vmatprep.subr.bf16.mxu0 0
    %607 = vmatpush1.bf16.msra.mxu0 0
    %608 = vmatprep.mubr.bf16.mxu0 0
    %609 = vmatmul.mubr.bf16.gmra.mrb[0].mxu0 %v574
    %v610 = vpop.f32.mrb[0].mxu0
    %v611 = vadd.f32 %v548, %v610
    %v612 = vpop.f32.mrb[0].mxu0
    %v613 = vpop.f32.mrb[0].mxu0
    %v614 = vpop.f32.mrb[0].mxu0
    %615 = vdwg.mxu0
    %v616 = vmax.f32 %v611, 0.0
    %v617 = vld [vmem:[%s4 + $0xf0] sm:$0xf]
    %v618 = vld [vmem:[%s4 + $0xf4] sm:$0xf]
    %v619 = vld [vmem:[%s4 + $0xf8] sm:$0xf]
    %v620 = vld [vmem:[%s4 + $0xfc] sm:$0xf]
    %v621 = vpack.c.bf16 %v616, %v616
    %v622 = vld [vmem:[%s5 + $0x4] sm:$0x1]
    %v623 = vlaneseq
    %v624 = vshrl.u32 %v623, 7
    %v625 = vsub.s32 0, %v624
    %v626 = vrot.slane %v622, %v625
    %v631 = vunpack.c.l.b16 %v617
    %v632 = vunpack.c.l.b16 %v618
    %v633 = vunpack.c.l.b16 %v619
    %v634 = vunpack.c.l.b16 %v620
    %v635 = vpack.c.b16 %v632, %v631
    %v636 = vpack.c.b16 %v634, %v633
    %v640 = vsel %vm373, %v621, 0
    %642 = vmatprep.subr.bf16.mxu0 0
    %643 = vmatpush1.bf16.msra.mxu0 %v635
    %644 = vmatprep.subr.bf16.mxu0 0
    %645 = vmatpush1.bf16.msra.mxu0 %v636
    %646 = vmatprep.subr.bf16.mxu0 0
    %647 = vmatpush1.bf16.msra.mxu0 0
    %648 = vmatprep.subr.bf16.mxu0 0
    %649 = vmatpush1.bf16.msra.mxu0 0
    %650 = vmatprep.subr.bf16.mxu0 0
    %651 = vmatpush1.bf16.msra.mxu0 0
    %652 = vmatprep.subr.bf16.mxu0 0
    %653 = vmatpush1.bf16.msra.mxu0 0
    %654 = vmatprep.subr.bf16.mxu0 0
    %655 = vmatpush1.bf16.msra.mxu0 0
    %656 = vmatprep.subr.bf16.mxu0 0
    %657 = vmatpush1.bf16.msra.mxu0 0
    %658 = vmatprep.subr.bf16.mxu0 0
    %659 = vmatpush1.bf16.msra.mxu0 0
    %660 = vmatprep.subr.bf16.mxu0 0
    %661 = vmatpush1.bf16.msra.mxu0 0
    %662 = vmatprep.subr.bf16.mxu0 0
    %663 = vmatpush1.bf16.msra.mxu0 0
    %664 = vmatprep.subr.bf16.mxu0 0
    %665 = vmatpush1.bf16.msra.mxu0 0
    %666 = vmatprep.subr.bf16.mxu0 0
    %667 = vmatpush1.bf16.msra.mxu0 0
    %668 = vmatprep.subr.bf16.mxu0 0
    %669 = vmatpush1.bf16.msra.mxu0 0
    %670 = vmatprep.subr.bf16.mxu0 0
    %671 = vmatpush1.bf16.msra.mxu0 0
    %672 = vmatprep.subr.bf16.mxu0 0
    %673 = vmatpush1.bf16.msra.mxu0 0
    %674 = vmatprep.mubr.bf16.mxu0 0
    %675 = vmatmul.mubr.bf16.gmra.mrb[0].mxu0 %v640
    %v676 = vpop.f32.mrb[0].mxu0
    %v677 = vadd.f32 %v626, %v676
    %v678 = vpop.f32.mrb[0].mxu0
    %v679 = vpop.f32.mrb[0].mxu0
    %v680 = vpop.f32.mrb[0].mxu0
    %681 = vdwg.mxu0
    %v682 = vld [vmem:[%s4 + $0x100] sm:$0xf]
    %v683 = vld [vmem:[%s4 + $0x104] sm:$0xf]
    %v684 = vld [vmem:[%s4 + $0x108] sm:$0xf]
    %v685 = vld [vmem:[%s4 + $0x10c] sm:$0xf]
    %v686 = vpack.c.bf16 %v677, %v677
    %v687 = vld [vmem:[%s5 + $0x5] sm:$0x1]
    %v688 = vlaneseq
    %v689 = vshrl.u32 %v688, 7
    %v690 = vsub.s32 0, %v689
    %v691 = vrot.slane %v687, %v690
    %v696 = vunpack.c.l.b16 %v682
    %v697 = vunpack.c.l.b16 %v683
    %v698 = vunpack.c.l.b16 %v684
    %v699 = vunpack.c.l.b16 %v685
    %v700 = vpack.c.b16 %v697, %v696
    %v701 = vpack.c.b16 %v699, %v698
    %v705 = vsel %vm373, %v686, 0
    %707 = vmatprep.subr.bf16.mxu0 0
    %708 = vmatpush1.bf16.msra.mxu0 %v700
    %709 = vmatprep.subr.bf16.mxu0 0
    %710 = vmatpush1.bf16.msra.mxu0 %v701
    %711 = vmatprep.subr.bf16.mxu0 0
    %712 = vmatpush1.bf16.msra.mxu0 0
    %713 = vmatprep.subr.bf16.mxu0 0
    %714 = vmatpush1.bf16.msra.mxu0 0
    %715 = vmatprep.subr.bf16.mxu0 0
    %716 = vmatpush1.bf16.msra.mxu0 0
    %717 = vmatprep.subr.bf16.mxu0 0
    %718 = vmatpush1.bf16.msra.mxu0 0
    %719 = vmatprep.subr.bf16.mxu0 0
    %720 = vmatpush1.bf16.msra.mxu0 0
    %721 = vmatprep.subr.bf16.mxu0 0
    %722 = vmatpush1.bf16.msra.mxu0 0
    %723 = vmatprep.subr.bf16.mxu0 0
    %724 = vmatpush1.bf16.msra.mxu0 0
    %725 = vmatprep.subr.bf16.mxu0 0
    %726 = vmatpush1.bf16.msra.mxu0 0
    %727 = vmatprep.subr.bf16.mxu0 0
    %728 = vmatpush1.bf16.msra.mxu0 0
    %729 = vmatprep.subr.bf16.mxu0 0
    %730 = vmatpush1.bf16.msra.mxu0 0
    %731 = vmatprep.subr.bf16.mxu0 0
    %732 = vmatpush1.bf16.msra.mxu0 0
    %733 = vmatprep.subr.bf16.mxu0 0
    %734 = vmatpush1.bf16.msra.mxu0 0
    %735 = vmatprep.subr.bf16.mxu0 0
    %736 = vmatpush1.bf16.msra.mxu0 0
    %737 = vmatprep.subr.bf16.mxu0 0
    %738 = vmatpush1.bf16.msra.mxu0 0
    %739 = vmatprep.mubr.bf16.mxu0 0
    %740 = vmatmul.mubr.bf16.gmra.mrb[0].mxu0 %v705
    %v741 = vpop.f32.mrb[0].mxu0
    %v742 = vadd.f32 %v691, %v741
    %v743 = vpop.f32.mrb[0].mxu0
    %v744 = vpop.f32.mrb[0].mxu0
    %v745 = vpop.f32.mrb[0].mxu0
    %746 = vdwg.mxu0
    %v747 = vsel %vm110, %v742, -inf
    %748 = vmax.xlane.f32.xlu0 %v747
    %v749 = vpop.xlane.xlu0 %748
    %v750 = vsub.f32 %v742, %v749
    %v751 = vmul.f32 %v750, 1.442695
    %v752 = vpow.pop %v751
    %v753 = vsel %vm110, %v752, 0.0
    %754 = vadd.xlane.f32.xlu0 %v753
    %v755 = vpop.xlane.xlu0 %754
    %v756 = vrcp.pop %v755
    %v757 = vmul.f32 %v752, %v756
    %v758 = vmul.f32 %v757, 8.0
    %v759 = vsub.f32 1.0, %v758
    %v760 = vpack.c.bf16 %v759, %v759
    %vm761 = vcmask 64512
    %v763 = vsel %vm761, %v760, 0
    %v766 = vsel %vm761, %v700, 0
    %v769 = vsel %vm761, %v701, 0
    %771 = vmatprep.subr.bf16.mxu0 0
    %772 = vmatpush1.bf16.xpose.msra.mxu0 %v766
    %773 = vmatprep.subr.bf16.mxu0 0
    %774 = vmatpush1.bf16.xpose.msra.mxu0 %v769
    %775 = vmatprep.subr.bf16.mxu0 0
    %776 = vmatpush1.bf16.xpose.msra.mxu0 0
    %777 = vmatprep.subr.bf16.mxu0 0
    %778 = vmatpush1.bf16.xpose.msra.mxu0 0
    %779 = vmatprep.subr.bf16.mxu0 0
    %780 = vmatpush1.bf16.xpose.msra.mxu0 0
    %781 = vmatprep.subr.bf16.mxu0 0
    %782 = vmatpush1.bf16.xpose.msra.mxu0 0
    %783 = vmatprep.subr.bf16.mxu0 0
    %784 = vmatpush1.bf16.xpose.msra.mxu0 0
    %785 = vmatprep.subr.bf16.mxu0 0
    %786 = vmatpush1.bf16.xpose.msra.mxu0 0
    %787 = vmatprep.subr.bf16.mxu0 0
    %788 = vmatpush1.bf16.xpose.msra.mxu0 0
    %789 = vmatprep.subr.bf16.mxu0 0
    %790 = vmatpush1.bf16.xpose.msra.mxu0 0
    %791 = vmatprep.subr.bf16.mxu0 0
    %792 = vmatpush1.bf16.xpose.msra.mxu0 0
    %793 = vmatprep.subr.bf16.mxu0 0
    %794 = vmatpush1.bf16.xpose.msra.mxu0 0
    %795 = vmatprep.subr.bf16.mxu0 0
    %796 = vmatpush1.bf16.xpose.msra.mxu0 0
    %797 = vmatprep.subr.bf16.mxu0 0
    %798 = vmatpush1.bf16.xpose.msra.mxu0 0
    %799 = vmatprep.subr.bf16.mxu0 0
    %800 = vmatpush1.bf16.xpose.msra.mxu0 0
    %801 = vmatprep.subr.bf16.mxu0 0
    %802 = vmatpush1.bf16.xpose.msra.mxu0 0
    %803 = vmatprep.mubr.bf16.mxu0 0
    %804 = vmatmul.mubr.bf16.gmra.mrb[0].mxu0 %v763
    %v805 = vpop.f32.mrb[0].mxu0
    %v806 = vadd.f32 0.0, %v805
    %v807 = vpop.f32.mrb[0].mxu0
    %v808 = vpop.f32.mrb[0].mxu0
    %v809 = vpop.f32.mrb[0].mxu0
    %810 = vdwg.mxu0
    %v811 = vsub.f32 0.0, %v806
    %v812 = vadd.f32 %v677, %v811
    %v813 = vpack.c.bf16 %v811, %v811
    %v815 = vsel %vm373, %v813, 0
    %817 = vmatprep.subr.bf16.mxu0 0
    %818 = vmatpush1.bf16.msra.mxu0 %v700
    %819 = vmatprep.subr.bf16.mxu0 0
    %820 = vmatpush1.bf16.msra.mxu0 %v701
    %821 = vmatprep.subr.bf16.mxu0 0
    %822 = vmatpush1.bf16.msra.mxu0 0
    %823 = vmatprep.subr.bf16.mxu0 0
    %824 = vmatpush1.bf16.msra.mxu0 0
    %825 = vmatprep.subr.bf16.mxu0 0
    %826 = vmatpush1.bf16.msra.mxu0 0
    %827 = vmatprep.subr.bf16.mxu0 0
    %828 = vmatpush1.bf16.msra.mxu0 0
    %829 = vmatprep.subr.bf16.mxu0 0
    %830 = vmatpush1.bf16.msra.mxu0 0
    %831 = vmatprep.subr.bf16.mxu0 0
    %832 = vmatpush1.bf16.msra.mxu0 0
    %833 = vmatprep.subr.bf16.mxu0 0
    %834 = vmatpush1.bf16.msra.mxu0 0
    %835 = vmatprep.subr.bf16.mxu0 0
    %836 = vmatpush1.bf16.msra.mxu0 0
    %837 = vmatprep.subr.bf16.mxu0 0
    %838 = vmatpush1.bf16.msra.mxu0 0
    %839 = vmatprep.subr.bf16.mxu0 0
    %840 = vmatpush1.bf16.msra.mxu0 0
    %841 = vmatprep.subr.bf16.mxu0 0
    %842 = vmatpush1.bf16.msra.mxu0 0
    %843 = vmatprep.subr.bf16.mxu0 0
    %844 = vmatpush1.bf16.msra.mxu0 0
    %845 = vmatprep.subr.bf16.mxu0 0
    %846 = vmatpush1.bf16.msra.mxu0 0
    %847 = vmatprep.subr.bf16.mxu0 0
    %848 = vmatpush1.bf16.msra.mxu0 0
    %849 = vmatprep.mubr.bf16.mxu0 0
    %850 = vmatmul.mubr.bf16.gmra.mrb[0].mxu0 %v815
    %v851 = vpop.f32.mrb[0].mxu0
    %v852 = vadd.f32 0.0, %v851
    %v853 = vpop.f32.mrb[0].mxu0
    %v854 = vpop.f32.mrb[0].mxu0
    %v855 = vpop.f32.mrb[0].mxu0
    %856 = vdwg.mxu0
    %v857 = vadd.f32 %v742, %v852
    %vm858 = vcmask 257024
    %v859 = vsel %vm858, %v677, -inf
    %860 = vmax.xlane.f32.xlu0 %v859
    %v861 = vpop.xlane.xlu0 %860
    %v862 = vsub.f32 %v677, %v861
    %v863 = vmul.f32 %v862, 1.442695
    %v864 = vpow.pop %v863
    %v865 = vsel %vm858, %v864, 0.0
    %866 = vadd.xlane.f32.xlu0 %v865
    %v867 = vpop.xlane.xlu0 %866
    %v868 = vlog2.pop %v867
    %v869 = vmul.f32 %v868, 0.6931472
    %v870 = vsub.f32 %v862, %v869
    %v871 = vrcp.pop %v867
    %v872 = vmul.f32 %v864, %v871
    %v873 = vsel %vm858, %v812, -inf
    %874 = vmax.xlane.f32.xlu0 %v873
    %v875 = vpop.xlane.xlu0 %874
    %v876 = vsub.f32 %v812, %v875
    %v877 = vmul.f32 %v876, 1.442695
    %v878 = vpow.pop %v877
    %v879 = vsel %vm858, %v878, 0.0
    %880 = vadd.xlane.f32.xlu0 %v879
    %v881 = vpop.xlane.xlu0 %880
    %v882 = vlog2.pop %v881
    %v883 = vmul.f32 %v882, 0.6931472
    %v884 = vsub.f32 %v876, %v883
    %v885 = vsub.f32 %v870, %v884
    %v886 = vmul.f32 %v872, %v885
    %v887 = vsel %vm858, %v886, 0.0
    %888 = vadd.xlane.f32.xlu0 %v887
    %v889 = vpop.xlane.xlu0 %888
    %v890 = vrot.slane %v889, 4
    %v891 = vadd.f32 %v889, %v890
    %v892 = vrot.slane %v891, 2
    %v893 = vadd.f32 %v891, %v892
    %v894 = vrot.slane %v893, 1
    %v895 = vadd.f32 %v893, %v894
    %s896 = vtos %v895
    %v897 = vld [vmem:[%s3] sm:$0xf]
    %vm898 = vcmp.eq.f32.partialorder %v742, %v749
    %v899 = vsel %vm898, %v28, 2147483647
    %v900 = vsel %vm110, %v899, 2147483647
    %v901 = vand.u32 %v900, 65535
    %v902 = vshra.s32 %v900, 16
    %v903 = vcvt.s32.f32 %v901
    %v904 = vcvt.s32.f32 %v902
    %905 = vmin.xlane.f32.xlu0 %v904
    %v906 = vpop.xlane.xlu0 %905
    %vm907 = vcmp.eq.f32.partialorder %v904, %v906
    %v908 = vsel %vm907, %v903, inf
    %909 = vmin.xlane.f32.xlu0 %v908
    %v910 = vpop.xlane.xlu0 %909
    %v911 = vcvt.f32.s32 %v910
    %v912 = vcvt.f32.s32 %v906
    %v913 = vshll.u32 %v912, 16
    %v914 = vadd.s32 %v913, %v911
    %vm915 = vcmp.ne.s32.totalorder %v914, %v897
    %v916 = vsel %vm915, 1, 0
    %v917 = vcvt.s32.f32 %v916
    %vm918 = vcmask 3072
    %v919 = vsel %vm918, %v917, 0.0
    %920 = vadd.xlane.f32.xlu0 %v919
    %v921 = vpop.xlane.xlu0 %920
    %v922 = vrot.slane %v921, 4
    %v923 = vadd.f32 %v921, %v922
    %v924 = vrot.slane %v923, 2
    %v925 = vadd.f32 %v923, %v924
    %v926 = vrot.slane %v925, 1
    %v927 = vadd.f32 %v925, %v926
    %s928 = vtos %v927
    %v929 = vsel %vm110, %v857, -inf
    %930 = vmax.xlane.f32.xlu0 %v929
    %v931 = vpop.xlane.xlu0 %930
    %vm932 = vcmp.eq.f32.partialorder %v857, %v931
    %v933 = vsel %vm932, %v28, 2147483647
    %v934 = vsel %vm110, %v933, 2147483647
    %v935 = vand.u32 %v934, 65535
    %v936 = vshra.s32 %v934, 16
    %v937 = vcvt.s32.f32 %v935
    %v938 = vcvt.s32.f32 %v936
    %939 = vmin.xlane.f32.xlu0 %v938
    %v940 = vpop.xlane.xlu0 %939
    %vm941 = vcmp.eq.f32.partialorder %v938, %v940
    %v942 = vsel %vm941, %v937, inf
    %943 = vmin.xlane.f32.xlu0 %v942
    %v944 = vpop.xlane.xlu0 %943
    %v945 = vcvt.f32.s32 %v944
    %v946 = vcvt.f32.s32 %v940
    %v947 = vshll.u32 %v946, 16
    %v948 = vadd.s32 %v947, %v945
    %vm949 = vcmp.eq.s32.totalorder %v948, %v897
    %v950 = vsel %vm949, 1, 0
    %v951 = vcvt.s32.f32 %v950
    %v952 = vsel %vm918, %v951, 0.0
    %953 = vadd.xlane.f32.xlu0 %v952
    %v954 = vpop.xlane.xlu0 %953
    %v955 = vrot.slane %v954, 4
    %v956 = vadd.f32 %v954, %v955
    %v957 = vrot.slane %v956, 2
    %v958 = vadd.f32 %v956, %v957
    %v959 = vrot.slane %v958, 1
    %v960 = vadd.f32 %v958, %v959
    %s961 = vtos %v960
    %s962 = smul.f32 %s896, 0.25
    %s963 = sadd.f32 %s928, %s961
    %s964 = smul.f32 %s963, 0.25
    %p965 = scmp.eq.s32.totalorder 0, 0
    // Predicated region
    $region26: #{mml_base_vta_late_forward.1} parent=1 // pred_check
      %p966 = pneg %p965
    $region27: #{mml_base_vta_late_forward.1} parent=1 // pred_check_branch
      %968 = sbr.rel (%p966) target = $region29
    $region28: #{mml_base_vta_late_forward.1} parent=1 // pred_region
      %s969 = scalar_lea.smem [#allocation2], 0
      %970 = sst [smem:[%s969]] 0.0
      %s971 = scalar_lea.smem [#allocation2], 1
      %972 = sst [smem:[%s971]] 0.0
      %s973 = scalar_lea.smem [#allocation2], 2
      %974 = sst [smem:[%s973]] 0.0
      %s975 = scalar_lea.smem [#allocation2], 3
      %976 = sst [smem:[%s975]] 0.0
    $region29: #{mml_base_vta_late_forward.1} parent=1 // pred_fallthru
      _
    %s977 = sld [smem:[#allocation2]]
    %s978 = smul.f32 %s962, 0.75
    %s979 = sadd.f32 %s964, %s978
    %s980 = sadd.f32 %s977, %s979
    %s981 = scalar_lea.smem [#allocation2], 0
    %982 = sst [smem:[%s981]] %s980
    %s983 = sld [smem:[#allocation2 + $0x1]]
    %s984 = sadd.f32 %s983, %s964
    %s985 = scalar_lea.smem [#allocation2], 1
    %986 = sst [smem:[%s985]] %s984
    %s987 = sld [smem:[#allocation2 + $0x2]]
    %s988 = sadd.f32 %s987, %s962
    %s989 = scalar_lea.smem [#allocation2], 2
    %990 = sst [smem:[%s989]] %s988
    %s991 = sld [smem:[#allocation2 + $0x3]]
    %s992 = sadd.f32 %s991, %s962
    %s993 = scalar_lea.smem [#allocation2], 3
    %994 = sst [smem:[%s993]] %s992
    // Predicated region
    $region30: #{mml_base_vta_late_forward.1} parent=1 // pred_check
      _
    $region31: #{mml_base_vta_late_forward.1} parent=1 // pred_check_branch
      %996 = sbr.rel (0) target = $region33
    $region32: #{mml_base_vta_late_forward.1} parent=1 // pred_region
      %s998 = ssub.s32 16, 16
      %999 = vsyncadd [#allocation3], %s998
      %s1001 = sshll.u32 %s6, 4
      %s1002 = int_to_ptr.vmem [resolvable:$true] %s1001
      %1004 = dma.smem_to_vmem [#allocation2], 16, %s1002, [#allocation3]
    $region33: #{mml_base_vta_late_forward.1} parent=1 // pred_fallthru
      _
    // Predicated region
    $region34: #{mml_base_vta_late_forward.1} parent=1 // pred_check
      _
    $region35: #{mml_base_vta_late_forward.1} parent=1 // pred_check_branch
      %1006 = sbr.rel (0) target = $region37
    $region36: #{mml_base_vta_late_forward.1} parent=1 // pred_region
      %1007 = dma.done [#allocation3], 16
    $region37: #{mml_base_vta_late_forward.1} parent=1 // pred_fallthru
      _
    %1008 = sfence
    %1009 = vsyncpa [#allocation3], 1

</llo_original>
